<compile_context>
chip_gen: v6e
topology: v6e:2x2x1
jax: 0.10.0
libtpu: 0.0.40
codegen_flags: <defaults>
</compile_context>

<pallas_src>
import math
import numpy as np
import jax
import jax.numpy as jnp
from jax.experimental import pallas as pl
from jax.experimental.pallas import tpu as pltpu

# ----------------------------- configuration (small shapes) -----------------------------
DIM      = 32                      # model dim
HEADS    = 4
DIM_HEAD = 32
INNER    = HEADS * DIM_HEAD        # 128  -> lane-dense q / k / v / probabilities
SCALE    = DIM_HEAD ** (-0.5)

BATCH = 2
H = W = 8
N = H * W                          # 64 tokens (sequence length)


# ------------------------------------- kernel -------------------------------------------
def _attention_kernel(x_ref, wq_ref, wkt_ref, wv_ref, wout_ref, bout_ref, o_ref):
    # x_ref    : (B_TILE, N, DIM)
    # wq_ref   : (DIM, INNER)   -- softmax scale already folded in
    # wkt_ref  : (INNER, DIM)   -- Wk pre-transposed so k^T is produced directly
    # wv_ref   : (DIM, INNER)
    # wout_ref : (INNER, DIM)   bout_ref : (1, DIM)
    # o_ref    : (B_TILE, N, DIM)
    bt, n, d = x_ref.shape
    inner = wq_ref.shape[1]
    heads = inner // DIM_HEAD
    dh = DIM_HEAD
    m_rows = bt * n

    # ---- QKV projection: batch folded into the matmul M dimension ----------------------
    xf   = x_ref[...].reshape(m_rows, d)               # leading-dim collapse: free
    x16  = xf.astype(jnp.bfloat16)
    xt16 = xf.T.astype(jnp.bfloat16)                   # ONE small (M,DIM)->(DIM,M) transpose
    wq16  = wq_ref[...].astype(jnp.bfloat16)
    wkt16 = wkt_ref[...].astype(jnp.bfloat16)
    wv16  = wv_ref[...].astype(jnp.bfloat16)

    q  = jnp.dot(x16,   wq16, preferred_element_type=jnp.float32)   # (M, INNER), pre-scaled
    kt = jnp.dot(wkt16, xt16, preferred_element_type=jnp.float32)   # (INNER, M)  == k^T
    v  = jnp.dot(x16,   wv16, preferred_element_type=jnp.float32)   # (M, INNER)

    q16  = q.astype(jnp.bfloat16)
    kt16 = kt.astype(jnp.bfloat16)
    v16  = v.astype(jnp.bfloat16)

    # ---- score tiles for every (batch, head), stacked along sublanes -------------------
    dots = []
    for b in range(bt):
        r0 = b * n
        for h in range(heads):
            c0 = h * dh
            dots.append(jnp.dot(q16[r0:r0 + n, c0:c0 + dh],
                                kt16[c0:c0 + dh, r0:r0 + n],
                                preferred_element_type=jnp.float32))   # (n, n)
    dots_all = jnp.concatenate(dots, axis=0)          # (bt*heads*n, n): sublane-only concat

    # ---- single softmax pass (f32), normalization deferred ------------------------------
    m = jnp.max(dots_all, axis=-1, keepdims=True)
    p = jnp.exp(dots_all - m)                          # EUP
    l = jnp.sum(p, axis=-1, keepdims=True)
    r = pl.reciprocal(l, approx=True)                  # (bt*heads*n, 1), EUP
    p16 = p.astype(jnp.bfloat16)
    # dropout(p=0.0) == identity

    # ---- PV + per-head accumulation straight into the output projection -----------------
    wout = wout_ref[...]                               # (INNER, DIM) f32
    bias = bout_ref[...]                               # (1, DIM)
    for b in range(bt):
        r0 = b * n
        acc = jnp.zeros((n, d), jnp.float32)
        for h in range(heads):
            c0 = h * dh
            s0 = (b * heads + h) * n
            o_h = jnp.dot(p16[s0:s0 + n, :], v16[r0:r0 + n, c0:c0 + dh],
                          preferred_element_type=jnp.float32)          # (n, dh)
            o_h = o_h * r[s0:s0 + n, :]                                # deferred softmax norm
            acc = acc + jnp.dot(o_h, wout[c0:c0 + dh, :],
                                preferred_element_type=jnp.float32)    # (n, d)
        o_ref[b] = acc + bias                                          # only HBM store


# ------------------------------------ wrapper --------------------------------------------
def attention_forward(x, kp, *, b_tile=None):
    b, n, d = x.shape
    if b_tile is None:
        # v7x has 2 TensorCores/chip: keep a 2-way "parallel" grid when B is even.
        # On single-TC v5e/v6e, pass b_tile=b to collapse everything into one grid step.
        b_tile = b // 2 if (b % 2 == 0 and b >= 2) else b
    assert b % b_tile == 0
    inner = kp['w_q'].shape[1]
    return pl.pallas_call(
        _attention_kernel,
        out_shape=jax.ShapeDtypeStruct((b, n, d), jnp.float32),
        grid=(b // b_tile,),
        in_specs=[pl.BlockSpec((b_tile, n, d), lambda i: (i, 0, 0)),
                  pl.BlockSpec((d, inner),     lambda i: (0, 0)),
                  pl.BlockSpec((inner, d),     lambda i: (0, 0)),
                  pl.BlockSpec((d, inner),     lambda i: (0, 0)),
                  pl.BlockSpec((inner, d),     lambda i: (0, 0)),
                  pl.BlockSpec((1, d),         lambda i: (0, 0))],
        out_specs=pl.BlockSpec((b_tile, n, d), lambda i: (i, 0, 0)),
        compiler_params=pltpu.CompilerParams(dimension_semantics=("parallel",)),
    )(x, kp['w_q'], kp['w_kt'], kp['w_v'], kp['w_out'], kp['b_out'])
    # TODO(synk): a lane-dense (B, N/4, 128) output view would make the final store a
    # full-lane vst, but only if the downstream consumer accepts that layout.


# ----------------------------------- parameters ------------------------------------------
def init_params(key):
    """Torch-equivalent parameters (nn.Linear default init)."""
    k0, k1, k2 = jax.random.split(key, 3)
    lim_qkv = 1.0 / math.sqrt(DIM)           # fan_in = DIM
    w_qkv = jax.random.uniform(k0, (3, DIM, INNER), jnp.float32, -lim_qkv, lim_qkv)
    lim_o = 1.0 / math.sqrt(INNER)            # fan_in = INNER
    w_out = jax.random.uniform(k1, (INNER, DIM), jnp.float32, -lim_o, lim_o)
    b_out = jax.random.uniform(k2, (1, DIM), jnp.float32, -lim_o, lim_o)
    return dict(w_qkv=w_qkv, w_out=w_out, b_out=b_out)


def prepare_kernel_params(p):
    """One-time (per parameter set) re-layout: fold the softmax scale into Wq and
    pre-transpose Wk so the kernel never rescales scores or transposes K per head."""
    return dict(w_q=p['w_qkv'][0] * SCALE,
                w_kt=p['w_qkv'][1].T,
                w_v=p['w_qkv'][2],
                w_out=p['w_out'],
                b_out=p['b_out'])


# -------------------------------- pure-JAX reference -------------------------------------
def reference_forward(x, p):
    b, n, _ = x.shape
    q = x @ p['w_qkv'][0]
    k = x @ p['w_qkv'][1]
    v = x @ p['w_qkv'][2]

    def to_heads(t):
        return t.reshape(b, n, HEADS, DIM_HEAD).transpose(0, 2, 1, 3)   # b h n d

    qh, kh, vh = to_heads(q), to_heads(k), to_heads(v)
    dots = jnp.einsum('bhid,bhjd->bhij', qh, kh) * SCALE
    attn = jax.nn.softmax(dots, axis=-1)
    # dropout(p=0.0) == identity
    out = jnp.einsum('bhij,bhjd->bhid', attn, vh)
    out = out.transpose(0, 2, 1, 3).reshape(b, n, INNER)                # b n (h d)
    return out @ p['w_out'] + p['b_out'][0]


# --------------------------------------- main --------------------------------------------
if __name__ == "__main__":
    key = jax.random.PRNGKey(0)
    k_x, k_p = jax.random.split(key)
    params = init_params(k_p)
    kparams = prepare_kernel_params(params)
    x = jax.random.normal(k_x, (BATCH, N, DIM), jnp.float32)            # (B, N=H*W, dim)

    out = jax.block_until_ready(attention_forward(x, kparams))

    with jax.default_matmul_precision('float32'):
        ref = jax.block_until_ready(reference_forward(x, params))

    np.testing.assert_allclose(np.asarray(out), np.asarray(ref), atol=1e-2, rtol=1e-2)
    assert out.shape == (BATCH, N, DIM)
    print("KERNEL_OK")
</pallas_src>

<mosaic_0001>
module attributes {stable_mosaic.version = 11 : i64} {
  func.func @_attention_kernel(%arg0: i32, %arg1: memref<1x64x32xf32, #tpu.memory_space<vmem>>, %arg2: memref<32x128xf32, #tpu.memory_space<vmem>>, %arg3: memref<128x32xf32, #tpu.memory_space<vmem>>, %arg4: memref<32x128xf32, #tpu.memory_space<vmem>>, %arg5: memref<128x32xf32, #tpu.memory_space<vmem>>, %arg6: memref<1x32xf32, #tpu.memory_space<vmem>>, %arg7: memref<1x64x32xf32, #tpu.memory_space<vmem>>) attributes {dimension_semantics = [#tpu.dimension_semantics<parallel>], iteration_bounds = array<i64: 2>, scalar_prefetch = 0 : i64, scratch_operands = 0 : i64, tpu.core_type = #tpu.core_type<tc>, window_params = [{transform_indices = @transform_0, window_bounds = array<i64: 1, 64, 32>}, {pipeline_mode = #tpu.pipeline_mode<synchronous>, transform_indices = @transform_1, window_bounds = array<i64: 32, 128>}, {pipeline_mode = #tpu.pipeline_mode<synchronous>, transform_indices = @transform_2, window_bounds = array<i64: 128, 32>}, {pipeline_mode = #tpu.pipeline_mode<synchronous>, transform_indices = @transform_3, window_bounds = array<i64: 32, 128>}, {pipeline_mode = #tpu.pipeline_mode<synchronous>, transform_indices = @transform_4, window_bounds = array<i64: 128, 32>}, {pipeline_mode = #tpu.pipeline_mode<synchronous>, transform_indices = @transform_5, window_bounds = array<i64: 1, 32>}, {transform_indices = @transform_6, window_bounds = array<i64: 1, 64, 32>}]} {
    %c0 = arith.constant 0 : index
    %c0_0 = arith.constant 0 : index
    %c0_1 = arith.constant 0 : index
    %0 = vector.load %arg1[%c0, %c0_0, %c0_1] : memref<1x64x32xf32, #tpu.memory_space<vmem>>, vector<1x64x32xf32>
    %1 = vector.shape_cast %0 : vector<1x64x32xf32> to vector<64x32xf32>
    %2 = arith.truncf %1 : vector<64x32xf32> to vector<64x32xbf16>
    %3 = tpu.transpose %1, [1, 0] : vector<64x32xf32> -> vector<32x64xf32>
    %4 = arith.truncf %3 : vector<32x64xf32> to vector<32x64xbf16>
    %c0_2 = arith.constant 0 : index
    %c0_3 = arith.constant 0 : index
    %5 = vector.load %arg2[%c0_2, %c0_3] : memref<32x128xf32, #tpu.memory_space<vmem>>, vector<32x128xf32>
    %6 = arith.truncf %5 : vector<32x128xf32> to vector<32x128xbf16>
    %c0_4 = arith.constant 0 : index
    %c0_5 = arith.constant 0 : index
    %7 = vector.load %arg3[%c0_4, %c0_5] : memref<128x32xf32, #tpu.memory_space<vmem>>, vector<128x32xf32>
    %8 = arith.truncf %7 : vector<128x32xf32> to vector<128x32xbf16>
    %c0_6 = arith.constant 0 : index
    %c0_7 = arith.constant 0 : index
    %9 = vector.load %arg4[%c0_6, %c0_7] : memref<32x128xf32, #tpu.memory_space<vmem>>, vector<32x128xf32>
    %10 = arith.truncf %9 : vector<32x128xf32> to vector<32x128xbf16>
    %cst = arith.constant dense<0.000000e+00> : vector<64x128xf32>
    %11 = tpu.matmul %2, %6, %cst {dimension_numbers = #tpu.dot_dimension_numbers<[1], [0], [0], [1], [0, 0, 1, 1], [], []>} : vector<64x32xbf16>, vector<32x128xbf16>, vector<64x128xf32> -> vector<64x128xf32>
    %cst_8 = arith.constant dense<0.000000e+00> : vector<128x64xf32>
    %12 = tpu.matmul %8, %4, %cst_8 {dimension_numbers = #tpu.dot_dimension_numbers<[1], [0], [0], [1], [0, 0, 1, 1], [], []>} : vector<128x32xbf16>, vector<32x64xbf16>, vector<128x64xf32> -> vector<128x64xf32>
    %cst_9 = arith.constant dense<0.000000e+00> : vector<64x128xf32>
    %13 = tpu.matmul %2, %10, %cst_9 {dimension_numbers = #tpu.dot_dimension_numbers<[1], [0], [0], [1], [0, 0, 1, 1], [], []>} : vector<64x32xbf16>, vector<32x128xbf16>, vector<64x128xf32> -> vector<64x128xf32>
    %14 = arith.truncf %11 : vector<64x128xf32> to vector<64x128xbf16>
    %15 = arith.truncf %12 : vector<128x64xf32> to vector<128x64xbf16>
    %16 = arith.truncf %13 : vector<64x128xf32> to vector<64x128xbf16>
    %17 = vector.extract_strided_slice %14 {offsets = [0, 0], sizes = [64, 32], strides = [1, 1]} : vector<64x128xbf16> to vector<64x32xbf16>
    %18 = vector.extract_strided_slice %15 {offsets = [0, 0], sizes = [32, 64], strides = [1, 1]} : vector<128x64xbf16> to vector<32x64xbf16>
    %cst_10 = arith.constant dense<0.000000e+00> : vector<64x64xf32>
    %19 = tpu.matmul %17, %18, %cst_10 {dimension_numbers = #tpu.dot_dimension_numbers<[1], [0], [0], [1], [0, 0, 1, 1], [], []>} : vector<64x32xbf16>, vector<32x64xbf16>, vector<64x64xf32> -> vector<64x64xf32>
    %20 = vector.extract_strided_slice %14 {offsets = [0, 32], sizes = [64, 32], strides = [1, 1]} : vector<64x128xbf16> to vector<64x32xbf16>
    %21 = vector.extract_strided_slice %15 {offsets = [32, 0], sizes = [32, 64], strides = [1, 1]} : vector<128x64xbf16> to vector<32x64xbf16>
    %cst_11 = arith.constant dense<0.000000e+00> : vector<64x64xf32>
    %22 = tpu.matmul %20, %21, %cst_11 {dimension_numbers = #tpu.dot_dimension_numbers<[1], [0], [0], [1], [0, 0, 1, 1], [], []>} : vector<64x32xbf16>, vector<32x64xbf16>, vector<64x64xf32> -> vector<64x64xf32>
    %23 = vector.extract_strided_slice %14 {offsets = [0, 64], sizes = [64, 32], strides = [1, 1]} : vector<64x128xbf16> to vector<64x32xbf16>
    %24 = vector.extract_strided_slice %15 {offsets = [64, 0], sizes = [32, 64], strides = [1, 1]} : vector<128x64xbf16> to vector<32x64xbf16>
    %cst_12 = arith.constant dense<0.000000e+00> : vector<64x64xf32>
    %25 = tpu.matmul %23, %24, %cst_12 {dimension_numbers = #tpu.dot_dimension_numbers<[1], [0], [0], [1], [0, 0, 1, 1], [], []>} : vector<64x32xbf16>, vector<32x64xbf16>, vector<64x64xf32> -> vector<64x64xf32>
    %26 = vector.extract_strided_slice %14 {offsets = [0, 96], sizes = [64, 32], strides = [1, 1]} : vector<64x128xbf16> to vector<64x32xbf16>
    %27 = vector.extract_strided_slice %15 {offsets = [96, 0], sizes = [32, 64], strides = [1, 1]} : vector<128x64xbf16> to vector<32x64xbf16>
    %cst_13 = arith.constant dense<0.000000e+00> : vector<64x64xf32>
    %28 = tpu.matmul %26, %27, %cst_13 {dimension_numbers = #tpu.dot_dimension_numbers<[1], [0], [0], [1], [0, 0, 1, 1], [], []>} : vector<64x32xbf16>, vector<32x64xbf16>, vector<64x64xf32> -> vector<64x64xf32>
    %29 = tpu.concatenate %19, %22, %25, %28 in 0 : vector<64x64xf32>, vector<64x64xf32>, vector<64x64xf32>, vector<64x64xf32> -> vector<256x64xf32>
    %cst_14 = arith.constant dense<0xFF800000> : vector<256xf32>
    %30 = vector.multi_reduction <maximumf>, %29, %cst_14 [1] : vector<256x64xf32> to vector<256xf32>
    %31 = vector.shape_cast %30 : vector<256xf32> to vector<256x1xf32>
    %32 = vector.broadcast %31 : vector<256x1xf32> to vector<256x64xf32>
    %33 = arith.subf %29, %32 : vector<256x64xf32>
    %34 = math.exp %33 : vector<256x64xf32>
    %cst_15 = arith.constant dense<0.000000e+00> : vector<256xf32>
    %35 = vector.multi_reduction <add>, %34, %cst_15 [1] : vector<256x64xf32> to vector<256xf32>
    %36 = vector.shape_cast %35 : vector<256xf32> to vector<256x1xf32>
    %37 = tpu.reciprocal %36 {approx = true} : vector<256x1xf32> -> vector<256x1xf32>
    %38 = arith.truncf %34 : vector<256x64xf32> to vector<256x64xbf16>
    %c0_16 = arith.constant 0 : index
    %c0_17 = arith.constant 0 : index
    %39 = vector.load %arg5[%c0_16, %c0_17] : memref<128x32xf32, #tpu.memory_space<vmem>>, vector<128x32xf32>
    %c0_18 = arith.constant 0 : index
    %c0_19 = arith.constant 0 : index
    %40 = vector.load %arg6[%c0_18, %c0_19] : memref<1x32xf32, #tpu.memory_space<vmem>>, vector<1x32xf32>
    %cst_20 = arith.constant 0.000000e+00 : f32
    %41 = vector.broadcast %cst_20 : f32 to vector<64x32xf32>
    %42 = vector.extract_strided_slice %38 {offsets = [0, 0], sizes = [64, 64], strides = [1, 1]} : vector<256x64xbf16> to vector<64x64xbf16>
    %43 = vector.extract_strided_slice %16 {offsets = [0, 0], sizes = [64, 32], strides = [1, 1]} : vector<64x128xbf16> to vector<64x32xbf16>
    %cst_21 = arith.constant dense<0.000000e+00> : vector<64x32xf32>
    %44 = tpu.matmul %42, %43, %cst_21 {dimension_numbers = #tpu.dot_dimension_numbers<[1], [0], [0], [1], [0, 0, 1, 1], [], []>} : vector<64x64xbf16>, vector<64x32xbf16>, vector<64x32xf32> -> vector<64x32xf32>
    %45 = vector.extract_strided_slice %37 {offsets = [0, 0], sizes = [64, 1], strides = [1, 1]} : vector<256x1xf32> to vector<64x1xf32>
    %46 = vector.broadcast %45 : vector<64x1xf32> to vector<64x32xf32>
    %47 = arith.mulf %44, %46 : vector<64x32xf32>
    %48 = vector.extract_strided_slice %39 {offsets = [0, 0], sizes = [32, 32], strides = [1, 1]} : vector<128x32xf32> to vector<32x32xf32>
    %cst_22 = arith.constant dense<0.000000e+00> : vector<64x32xf32>
    %49 = tpu.matmul %47, %48, %cst_22 {dimension_numbers = #tpu.dot_dimension_numbers<[1], [0], [0], [1], [0, 0, 1, 1], [], []>} : vector<64x32xf32>, vector<32x32xf32>, vector<64x32xf32> -> vector<64x32xf32>
    %50 = arith.addf %41, %49 : vector<64x32xf32>
    %51 = vector.extract_strided_slice %38 {offsets = [64, 0], sizes = [64, 64], strides = [1, 1]} : vector<256x64xbf16> to vector<64x64xbf16>
    %52 = vector.extract_strided_slice %16 {offsets = [0, 32], sizes = [64, 32], strides = [1, 1]} : vector<64x128xbf16> to vector<64x32xbf16>
    %cst_23 = arith.constant dense<0.000000e+00> : vector<64x32xf32>
    %53 = tpu.matmul %51, %52, %cst_23 {dimension_numbers = #tpu.dot_dimension_numbers<[1], [0], [0], [1], [0, 0, 1, 1], [], []>} : vector<64x64xbf16>, vector<64x32xbf16>, vector<64x32xf32> -> vector<64x32xf32>
    %54 = vector.extract_strided_slice %37 {offsets = [64, 0], sizes = [64, 1], strides = [1, 1]} : vector<256x1xf32> to vector<64x1xf32>
    %55 = vector.broadcast %54 : vector<64x1xf32> to vector<64x32xf32>
    %56 = arith.mulf %53, %55 : vector<64x32xf32>
    %57 = vector.extract_strided_slice %39 {offsets = [32, 0], sizes = [32, 32], strides = [1, 1]} : vector<128x32xf32> to vector<32x32xf32>
    %cst_24 = arith.constant dense<0.000000e+00> : vector<64x32xf32>
    %58 = tpu.matmul %56, %57, %cst_24 {dimension_numbers = #tpu.dot_dimension_numbers<[1], [0], [0], [1], [0, 0, 1, 1], [], []>} : vector<64x32xf32>, vector<32x32xf32>, vector<64x32xf32> -> vector<64x32xf32>
    %59 = arith.addf %50, %58 : vector<64x32xf32>
    %60 = vector.extract_strided_slice %38 {offsets = [128, 0], sizes = [64, 64], strides = [1, 1]} : vector<256x64xbf16> to vector<64x64xbf16>
    %61 = vector.extract_strided_slice %16 {offsets = [0, 64], sizes = [64, 32], strides = [1, 1]} : vector<64x128xbf16> to vector<64x32xbf16>
    %cst_25 = arith.constant dense<0.000000e+00> : vector<64x32xf32>
    %62 = tpu.matmul %60, %61, %cst_25 {dimension_numbers = #tpu.dot_dimension_numbers<[1], [0], [0], [1], [0, 0, 1, 1], [], []>} : vector<64x64xbf16>, vector<64x32xbf16>, vector<64x32xf32> -> vector<64x32xf32>
    %63 = vector.extract_strided_slice %37 {offsets = [128, 0], sizes = [64, 1], strides = [1, 1]} : vector<256x1xf32> to vector<64x1xf32>
    %64 = vector.broadcast %63 : vector<64x1xf32> to vector<64x32xf32>
    %65 = arith.mulf %62, %64 : vector<64x32xf32>
    %66 = vector.extract_strided_slice %39 {offsets = [64, 0], sizes = [32, 32], strides = [1, 1]} : vector<128x32xf32> to vector<32x32xf32>
    %cst_26 = arith.constant dense<0.000000e+00> : vector<64x32xf32>
    %67 = tpu.matmul %65, %66, %cst_26 {dimension_numbers = #tpu.dot_dimension_numbers<[1], [0], [0], [1], [0, 0, 1, 1], [], []>} : vector<64x32xf32>, vector<32x32xf32>, vector<64x32xf32> -> vector<64x32xf32>
    %68 = arith.addf %59, %67 : vector<64x32xf32>
    %69 = vector.extract_strided_slice %38 {offsets = [192, 0], sizes = [64, 64], strides = [1, 1]} : vector<256x64xbf16> to vector<64x64xbf16>
    %70 = vector.extract_strided_slice %16 {offsets = [0, 96], sizes = [64, 32], strides = [1, 1]} : vector<64x128xbf16> to vector<64x32xbf16>
    %cst_27 = arith.constant dense<0.000000e+00> : vector<64x32xf32>
    %71 = tpu.matmul %69, %70, %cst_27 {dimension_numbers = #tpu.dot_dimension_numbers<[1], [0], [0], [1], [0, 0, 1, 1], [], []>} : vector<64x64xbf16>, vector<64x32xbf16>, vector<64x32xf32> -> vector<64x32xf32>
    %72 = vector.extract_strided_slice %37 {offsets = [192, 0], sizes = [64, 1], strides = [1, 1]} : vector<256x1xf32> to vector<64x1xf32>
    %73 = vector.broadcast %72 : vector<64x1xf32> to vector<64x32xf32>
    %74 = arith.mulf %71, %73 : vector<64x32xf32>
    %75 = vector.extract_strided_slice %39 {offsets = [96, 0], sizes = [32, 32], strides = [1, 1]} : vector<128x32xf32> to vector<32x32xf32>
    %cst_28 = arith.constant dense<0.000000e+00> : vector<64x32xf32>
    %76 = tpu.matmul %74, %75, %cst_28 {dimension_numbers = #tpu.dot_dimension_numbers<[1], [0], [0], [1], [0, 0, 1, 1], [], []>} : vector<64x32xf32>, vector<32x32xf32>, vector<64x32xf32> -> vector<64x32xf32>
    %77 = arith.addf %68, %76 : vector<64x32xf32>
    %78 = vector.broadcast %40 : vector<1x32xf32> to vector<64x32xf32>
    %79 = arith.addf %77, %78 : vector<64x32xf32>
    %c0_29 = arith.constant 0 : index
    %c0_30 = arith.constant 0 : index
    %c0_31 = arith.constant 0 : index
    %80 = vector.load %arg7[%c0_29, %c0_30, %c0_31] : memref<1x64x32xf32, #tpu.memory_space<vmem>>, vector<1x64x32xf32>
    %81 = vector.shape_cast %80 : vector<1x64x32xf32> to vector<64x32xf32>
    %82 = vector.shape_cast %79 : vector<64x32xf32> to vector<1x64x32xf32>
    tpu.vector_store %arg7[%c0_29, %c0_30, %c0_31], %82 {strides = array<i32>} : memref<1x64x32xf32, #tpu.memory_space<vmem>>, vector<1x64x32xf32>,
    return
  }
  func.func @transform_0(%arg0: i32) -> (i32, i32, i32) {
    %c0_i32 = arith.constant 0 : i32
    %c0_i32_0 = arith.constant 0 : i32
    %c0_i32_1 = arith.constant 0 : i32
    return %arg0, %c0_i32, %c0_i32_0 : i32, i32, i32
  }
  func.func @transform_1(%arg0: i32) -> (i32, i32) {
    %c0_i32 = arith.constant 0 : i32
    %c0_i32_0 = arith.constant 0 : i32
    %c0_i32_1 = arith.constant 0 : i32
    return %c0_i32, %c0_i32_0 : i32, i32
  }
  func.func @transform_2(%arg0: i32) -> (i32, i32) {
    %c0_i32 = arith.constant 0 : i32
    %c0_i32_0 = arith.constant 0 : i32
    %c0_i32_1 = arith.constant 0 : i32
    return %c0_i32, %c0_i32_0 : i32, i32
  }
  func.func @transform_3(%arg0: i32) -> (i32, i32) {
    %c0_i32 = arith.constant 0 : i32
    %c0_i32_0 = arith.constant 0 : i32
    %c0_i32_1 = arith.constant 0 : i32
    return %c0_i32, %c0_i32_0 : i32, i32
  }
  func.func @transform_4(%arg0: i32) -> (i32, i32) {
    %c0_i32 = arith.constant 0 : i32
    %c0_i32_0 = arith.constant 0 : i32
    %c0_i32_1 = arith.constant 0 : i32
    return %c0_i32, %c0_i32_0 : i32, i32
  }
  func.func @transform_5(%arg0: i32) -> (i32, i32) {
    %c0_i32 = arith.constant 0 : i32
    %c0_i32_0 = arith.constant 0 : i32
    %c0_i32_1 = arith.constant 0 : i32
    return %c0_i32, %c0_i32_0 : i32, i32
  }
  func.func @transform_6(%arg0: i32) -> (i32, i32, i32) {
    %c0_i32 = arith.constant 0 : i32
    %c0_i32_0 = arith.constant 0 : i32
    %c0_i32_1 = arith.constant 0 : i32
    return %arg0, %c0_i32, %c0_i32_0 : i32, i32, i32
  }
}

</mosaic_0001>

<llo_original>
// kernel: tpu_custom_call.1
$region0: #{tpu_custom_call.1}
  #allocation0 [shape = 'u32[]', space=smem, size = 0x4, offset = 0x4, fixed_abs, tag = 'smem constant byte address 0x4 - core index']
  #allocation1 [shape = 'u32[144,128]{1,0:T(1,128)}', space=vmem, size = 0x12000, scoped, tag = 'internal scratch']
  %s0 = inlined_call_operand.vmem [shape: f32[2,64,32], index: 0, kind: input, shape index: {}]
  %s1 = inlined_call_operand.vmem [shape: f32[32,128], index: 1, kind: input, shape index: {}]
  %s2 = inlined_call_operand.vmem [shape: f32[128,32], index: 2, kind: input, shape index: {}]
  %s3 = inlined_call_operand.vmem [shape: f32[32,128], index: 3, kind: input, shape index: {}]
  %s4 = inlined_call_operand.vmem [shape: f32[128,32], index: 4, kind: input, shape index: {}]
  %s5 = inlined_call_operand.vmem [shape: f32[1,32], index: 5, kind: input, shape index: {}]
  %s6 = inlined_call_operand.vmem [shape: f32[2,64,32], index: 6, kind: output, shape index: {}]
  %s7 = sld [smem:[#allocation0]]
  $region57: #{tpu_custom_call.1} parent=0
    _
  %s9 = ssub.s32 1, %s7
  %s10 = scalar_select 0, %s9, %s7
  loop: start=0, step=1, limit=4
  $region2: #{tpu_custom_call.1} parent=0 // loop_pre_header
    _
  $region3: #{tpu_custom_call.1} parent=0 // loop_header
    %s12 = sphi 0, %s16
    %p13 = scmp.ge.s32.totalorder %s12, 4
    %s22 = sphi 0, %s24
    %s25 = sphi 0, %s22
    %s26 = sphi 0, %s25
    %s42 = sphi 0, %s26
    %s46 = sphi 0, %s46
    %s48 = sphi 0, %s46
    %s49 = sphi 0, %s48
    %s63 = sphi 0, %s49
    %s67 = sphi 0, %s67
    %s69 = sphi 0, %s67
    %s70 = sphi 0, %s69
    %s84 = sphi 0, %s70
    %s88 = sphi 0, %s88
    %s90 = sphi 0, %s88
    %s91 = sphi 0, %s90
    %s105 = sphi 0, %s91
    %s109 = sphi 0, %s109
    %s111 = sphi 0, %s109
    %s112 = sphi 0, %s111
    %s126 = sphi 0, %s112
    %s130 = sphi 0, %s130
    %s132 = sphi 0, %s130
    %s133 = sphi 0, %s132
    %s147 = sphi 0, %s133
    %s153 = sphi 0, %s155
    %s156 = sphi 0, %s153
    %s157 = sphi 0, %s156
    %s173 = sphi 0, %s157
  $region4: #{tpu_custom_call.1} parent=0 // loop_header_branch
    %15 = sbr.rel (%p13) target = $region8
  $region5: #{tpu_custom_call.1} parent=0 // loop_body
    %s17 = ssub.s32 %s12, 1
    %s18 = ssub.s32 %s12, 2
    %s19 = sadd.s32 %s12, 1
    %s20 = ssub.s32 %s12, %s19
    %p21 = scmp.eq.s32.totalorder %s20, 0
    %s23 = sadd.s32 %s22, 1
    %s24 = scalar_select %p21, %s22, %s23
    %p27 = pneg %p21
    %p28 = scmp.eq.s32.totalorder %s12, 1
    %p29 = por %p27, %p28
    %p30 = scmp.ne.s32.totalorder %s22, %s25
    %p31 = scmp.eq.s32.totalorder %s12, 0
    %p32 = por %p30, %p31
    %p33 = scmp.ne.s32.totalorder %s22, %s25
    %p34 = scmp.eq.s32.totalorder %s17, 1
    %p35 = por %p33, %p34
    %p36 = scmp.ne.s32.totalorder %s25, %s26
    %p37 = scmp.eq.s32.totalorder %s17, 0
    %p38 = por %p36, %p37
    %p39 = scmp.ne.s32.totalorder %s25, %s26
    %p40 = scmp.eq.s32.totalorder %s18, 1
    %p41 = por %p39, %p40
    %p43 = scmp.ne.s32.totalorder %s26, %s42
    %p44 = scmp.eq.s32.totalorder %s18, 0
    %p45 = por %p43, %p44
    %s47 = sadd.s32 %s46, 1
    %p50 = scmp.eq.s32.totalorder %s12, 1
    %p51 = scmp.ne.s32.totalorder %s46, %s48
    %p52 = scmp.eq.s32.totalorder %s12, 0
    %p53 = por %p51, %p52
    %p54 = scmp.ne.s32.totalorder %s46, %s48
    %p55 = scmp.eq.s32.totalorder %s17, 1
    %p56 = por %p54, %p55
    %p57 = scmp.ne.s32.totalorder %s48, %s49
    %p58 = scmp.eq.s32.totalorder %s17, 0
    %p59 = por %p57, %p58
    %p60 = scmp.ne.s32.totalorder %s48, %s49
    %p61 = scmp.eq.s32.totalorder %s18, 1
    %p62 = por %p60, %p61
    %p64 = scmp.ne.s32.totalorder %s49, %s63
    %p65 = scmp.eq.s32.totalorder %s18, 0
    %p66 = por %p64, %p65
    %s68 = sadd.s32 %s67, 1
    %p71 = scmp.eq.s32.totalorder %s12, 1
    %p72 = scmp.ne.s32.totalorder %s67, %s69
    %p73 = scmp.eq.s32.totalorder %s12, 0
    %p74 = por %p72, %p73
    %p75 = scmp.ne.s32.totalorder %s67, %s69
    %p76 = scmp.eq.s32.totalorder %s17, 1
    %p77 = por %p75, %p76
    %p78 = scmp.ne.s32.totalorder %s69, %s70
    %p79 = scmp.eq.s32.totalorder %s17, 0
    %p80 = por %p78, %p79
    %p81 = scmp.ne.s32.totalorder %s69, %s70
    %p82 = scmp.eq.s32.totalorder %s18, 1
    %p83 = por %p81, %p82
    %p85 = scmp.ne.s32.totalorder %s70, %s84
    %p86 = scmp.eq.s32.totalorder %s18, 0
    %p87 = por %p85, %p86
    %s89 = sadd.s32 %s88, 1
    %p92 = scmp.eq.s32.totalorder %s12, 1
    %p93 = scmp.ne.s32.totalorder %s88, %s90
    %p94 = scmp.eq.s32.totalorder %s12, 0
    %p95 = por %p93, %p94
    %p96 = scmp.ne.s32.totalorder %s88, %s90
    %p97 = scmp.eq.s32.totalorder %s17, 1
    %p98 = por %p96, %p97
    %p99 = scmp.ne.s32.totalorder %s90, %s91
    %p100 = scmp.eq.s32.totalorder %s17, 0
    %p101 = por %p99, %p100
    %p102 = scmp.ne.s32.totalorder %s90, %s91
    %p103 = scmp.eq.s32.totalorder %s18, 1
    %p104 = por %p102, %p103
    %p106 = scmp.ne.s32.totalorder %s91, %s105
    %p107 = scmp.eq.s32.totalorder %s18, 0
    %p108 = por %p106, %p107
    %s110 = sadd.s32 %s109, 1
    %p113 = scmp.eq.s32.totalorder %s12, 1
    %p114 = scmp.ne.s32.totalorder %s109, %s111
    %p115 = scmp.eq.s32.totalorder %s12, 0
    %p116 = por %p114, %p115
    %p117 = scmp.ne.s32.totalorder %s109, %s111
    %p118 = scmp.eq.s32.totalorder %s17, 1
    %p119 = por %p117, %p118
    %p120 = scmp.ne.s32.totalorder %s111, %s112
    %p121 = scmp.eq.s32.totalorder %s17, 0
    %p122 = por %p120, %p121
    %p123 = scmp.ne.s32.totalorder %s111, %s112
    %p124 = scmp.eq.s32.totalorder %s18, 1
    %p125 = por %p123, %p124
    %p127 = scmp.ne.s32.totalorder %s112, %s126
    %p128 = scmp.eq.s32.totalorder %s18, 0
    %p129 = por %p127, %p128
    %s131 = sadd.s32 %s130, 1
    %p134 = scmp.eq.s32.totalorder %s12, 1
    %p135 = scmp.ne.s32.totalorder %s130, %s132
    %p136 = scmp.eq.s32.totalorder %s12, 0
    %p137 = por %p135, %p136
    %p138 = scmp.ne.s32.totalorder %s130, %s132
    %p139 = scmp.eq.s32.totalorder %s17, 1
    %p140 = por %p138, %p139
    %p141 = scmp.ne.s32.totalorder %s132, %s133
    %p142 = scmp.eq.s32.totalorder %s17, 0
    %p143 = por %p141, %p142
    %p144 = scmp.ne.s32.totalorder %s132, %s133
    %p145 = scmp.eq.s32.totalorder %s18, 1
    %p146 = por %p144, %p145
    %p148 = scmp.ne.s32.totalorder %s133, %s147
    %p149 = scmp.eq.s32.totalorder %s18, 0
    %p150 = por %p148, %p149
    %s151 = ssub.s32 %s12, %s19
    %p152 = scmp.eq.s32.totalorder %s151, 0
    %s154 = sadd.s32 %s153, 1
    %s155 = scalar_select %p152, %s153, %s154
    %p158 = pneg %p152
    %p159 = scmp.eq.s32.totalorder %s12, 1
    %p160 = por %p158, %p159
    %p161 = scmp.ne.s32.totalorder %s153, %s156
    %p162 = scmp.eq.s32.totalorder %s12, 0
    %p163 = por %p161, %p162
    %p164 = scmp.ne.s32.totalorder %s153, %s156
    %p165 = scmp.eq.s32.totalorder %s17, 1
    %p166 = por %p164, %p165
    %p167 = scmp.ne.s32.totalorder %s156, %s157
    %p168 = scmp.eq.s32.totalorder %s17, 0
    %p169 = por %p167, %p168
    %p170 = scmp.ne.s32.totalorder %s156, %s157
    %p171 = scmp.eq.s32.totalorder %s18, 1
    %p172 = por %p170, %p171
    %p174 = scmp.ne.s32.totalorder %s157, %s173
    %p175 = scmp.eq.s32.totalorder %s18, 0
    %p176 = por %p174, %p175
    %p177 = scmp.le.s32.totalorder 1, %s12
    %p178 = scmp.lt.s32.totalorder %s12, 3
    %p179 = pnand %p177, %p178
    %p180 = pneg %p179
    // Predicated region
    $region9: #{tpu_custom_call.1} parent=5 // pred_check
      _
    $region10: #{tpu_custom_call.1} parent=5 // pred_check_branch
      %182 = sbr.rel (%p179) target = $region12
    $region11: #{tpu_custom_call.1} parent=5 // pred_region
      %s183 = ssub.s32 %s12, 1
      // Predicated region
      $region13: #{tpu_custom_call.1} parent=11 // pred_check
        %p184 = pneg %p59
      $region14: #{tpu_custom_call.1} parent=11 // pred_check_branch
        %186 = sbr.rel (%p184) target = $region16
      $region15: #{tpu_custom_call.1} parent=11 // pred_region
        _
      $region16: #{tpu_custom_call.1} parent=11 // pred_fallthru
        _
      // Predicated region
      $region17: #{tpu_custom_call.1} parent=11 // pred_check
        %p187 = pneg %p80
      $region18: #{tpu_custom_call.1} parent=11 // pred_check_branch
        %189 = sbr.rel (%p187) target = $region20
      $region19: #{tpu_custom_call.1} parent=11 // pred_region
        _
      $region20: #{tpu_custom_call.1} parent=11 // pred_fallthru
        _
      // Predicated region
      $region21: #{tpu_custom_call.1} parent=11 // pred_check
        %p190 = pneg %p101
      $region22: #{tpu_custom_call.1} parent=11 // pred_check_branch
        %192 = sbr.rel (%p190) target = $region24
      $region23: #{tpu_custom_call.1} parent=11 // pred_region
        _
      $region24: #{tpu_custom_call.1} parent=11 // pred_fallthru
        _
      // Predicated region
      $region25: #{tpu_custom_call.1} parent=11 // pred_check
        %p193 = pneg %p122
      $region26: #{tpu_custom_call.1} parent=11 // pred_check_branch
        %195 = sbr.rel (%p193) target = $region28
      $region27: #{tpu_custom_call.1} parent=11 // pred_region
        _
      $region28: #{tpu_custom_call.1} parent=11 // pred_fallthru
        _
      // Predicated region
      $region29: #{tpu_custom_call.1} parent=11 // pred_check
        %p196 = pneg %p143
      $region30: #{tpu_custom_call.1} parent=11 // pred_check_branch
        %198 = sbr.rel (%p196) target = $region32
      $region31: #{tpu_custom_call.1} parent=11 // pred_region
        _
      $region32: #{tpu_custom_call.1} parent=11 // pred_fallthru
        _
    $region12: #{tpu_custom_call.1} parent=5 // pred_fallthru
      _
    %p199 = scmp.lt.s32.totalorder %s12, 2
    // Predicated region
    $region33: #{tpu_custom_call.1} parent=5 // pred_check
      %p200 = pneg %p199
    $region34: #{tpu_custom_call.1} parent=5 // pred_check_branch
      %202 = sbr.rel (%p200) target = $region36
    $region35: #{tpu_custom_call.1} parent=5 // pred_region
      // Predicated region
      $region37: #{tpu_custom_call.1} parent=35 // pred_check
        %p203 = pneg %p32
      $region38: #{tpu_custom_call.1} parent=35 // pred_check_branch
        %205 = sbr.rel (%p203) target = $region40
      $region39: #{tpu_custom_call.1} parent=35 // pred_region
        %p206 = scmp.lt.s32.totalorder %s12, 1
        %s207 = scalar_select %p206, %s12, 1
        %s208 = smul.addr %s207, 8
        %s209 = smul.addr %s208, 8
        %s210 = scalar_lea.vmem %s0, %s209
      $region40: #{tpu_custom_call.1} parent=35 // pred_fallthru
        _
    $region36: #{tpu_custom_call.1} parent=5 // pred_fallthru
      _
    %p211 = scmp.le.s32.totalorder 1, %s12
    %p212 = scmp.lt.s32.totalorder %s12, 3
    %p213 = pnand %p211, %p212
    %p214 = pneg %p213
    // Predicated region
    $region41: #{tpu_custom_call.1} parent=5 // pred_check
      _
    $region42: #{tpu_custom_call.1} parent=5 // pred_check_branch
      %216 = sbr.rel (%p213) target = $region44
    $region43: #{tpu_custom_call.1} parent=5 // pred_region
      %s217 = ssub.s32 %s12, 1
      %p218 = scmp.lt.s32.totalorder %s17, 1
      %s219 = scalar_select %p218, %s17, 1
      %s220 = smul.addr %s219, 8
      %s221 = smul.addr %s220, 8
      %s222 = scalar_lea.vmem %s0, %s221
      %p223 = pneg %p38
      %p224 = pneg %p35
      %p225 = pneg %p59
      %p226 = pneg %p56
      %p227 = pneg %p80
      %p228 = pneg %p77
      %p229 = pneg %p101
      %p230 = pneg %p98
      %p231 = pneg %p122
      %p232 = pneg %p119
      %p233 = pneg %p143
      %p234 = pneg %p140
      %p235 = pneg %p169
      %p236 = pneg %p166
      %p237 = scmp.lt.s32.totalorder %s17, 1
      %s238 = scalar_select %p237, %s17, 1
      %s239 = smul.addr %s238, 8
      %s240 = smul.addr %s239, 8
      %s241 = scalar_lea.vmem %s6, %s240
      %p242 = scmp.lt.s32.totalorder %s17, 1
      %s243 = scalar_select %p242, %s17, 1
      %s244 = smul.addr %s243, 8
      %s245 = smul.addr %s244, 8
      %s246 = scalar_lea.vmem %s0, %s245
      %p247 = scmp.lt.s32.totalorder %s17, 1
      %s248 = scalar_select %p247, %s17, 1
      %s249 = smul.addr %s248, 8
      %s250 = smul.addr %s249, 8
      %s251 = scalar_lea.vmem %s6, %s250
      %v253 = vld [vmem:[%s246] sm:$0xff]
      %v254 = vld [vmem:[%s246 + $0x8] sm:$0xff]
      %v255 = vld [vmem:[%s246 + $0x10] sm:$0xff]
      %v256 = vld [vmem:[%s246 + $0x18] sm:$0xff]
      %v257 = vld [vmem:[%s246 + $0x20] sm:$0xff]
      %v258 = vld [vmem:[%s246 + $0x28] sm:$0xff]
      %v259 = vld [vmem:[%s246 + $0x30] sm:$0xff]
      %v260 = vld [vmem:[%s246 + $0x38] sm:$0xff]
      %v261 = vpack.c.bf16 %v254, %v253
      %v262 = vpack.c.bf16 %v256, %v255
      %v263 = vpack.c.bf16 %v258, %v257
      %v264 = vpack.c.bf16 %v260, %v259
      %265 = vxpose.xlu0.b32.start [1/16] %v253, 128
      %266 = vxpose.xlu0.b32.cont [2/16] %v254, 128
      %267 = vxpose.xlu0.b32.cont [3/16] %v255, 128
      %268 = vxpose.xlu0.b32.cont [4/16] %v256, 128
      %269 = vxpose.xlu0.b32.cont [5/16] %v257, 128
      %270 = vxpose.xlu0.b32.cont [6/16] %v258, 128
      %271 = vxpose.xlu0.b32.cont [7/16] %v259, 128
      %272 = vxpose.xlu0.b32.cont [8/16] %v260, 128
      %273 = vxpose.xlu0.b32.cont [9/16] 0.0, 128
      %274 = vxpose.xlu0.b32.cont [10/16] 0.0, 128
      %275 = vxpose.xlu0.b32.cont [11/16] 0.0, 128
      %276 = vxpose.xlu0.b32.cont [12/16] 0.0, 128
      %277 = vxpose.xlu0.b32.cont [13/16] 0.0, 128
      %278 = vxpose.xlu0.b32.cont [14/16] 0.0, 128
      %279 = vxpose.xlu0.b32.cont [15/16] 0.0, 128
      %280 = vxpose.xlu0.b32.end [16/16] 0.0, 128
      %v281 = vpop.trf.xlu0
      %v282 = vpop.trf.xlu0
      %v283 = vpop.trf.xlu0
      %v284 = vpop.trf.xlu0
      %v285 = vpop.trf.xlu0
      %v286 = vpop.trf.xlu0
      %v287 = vpop.trf.xlu0
      %v288 = vpop.trf.xlu0
      %v289 = vpop.trf.xlu0
      %v290 = vpop.trf.xlu0
      %v291 = vpop.trf.xlu0
      %v292 = vpop.trf.xlu0
      %v293 = vpop.trf.xlu0
      %v294 = vpop.trf.xlu0
      %v295 = vpop.trf.xlu0
      %v296 = vpop.trf.xlu0
      %v297 = vpack.c.bf16 %v282, %v281
      %v298 = vpack.c.bf16 %v284, %v283
      %v299 = vld [vmem:[%s1] sm:$0xff]
      %v300 = vld [vmem:[%s1 + $0x8] sm:$0xff]
      %v301 = vld [vmem:[%s1 + $0x10] sm:$0xff]
      %v302 = vld [vmem:[%s1 + $0x18] sm:$0xff]
      %v303 = vpack.c.bf16 %v300, %v299
      %v304 = vpack.c.bf16 %v302, %v301
      %v305 = vld [vmem:[%s2] sm:$0xff]
      %v306 = vld [vmem:[%s2 + $0x8] sm:$0xff]
      %v307 = vld [vmem:[%s2 + $0x10] sm:$0xff]
      %v308 = vld [vmem:[%s2 + $0x18] sm:$0xff]
      %v309 = vld [vmem:[%s2 + $0x20] sm:$0xff]
      %v310 = vld [vmem:[%s2 + $0x28] sm:$0xff]
      %v311 = vld [vmem:[%s2 + $0x30] sm:$0xff]
      %v312 = vld [vmem:[%s2 + $0x38] sm:$0xff]
      %v313 = vld [vmem:[%s2 + $0x40] sm:$0xff]
      %v314 = vld [vmem:[%s2 + $0x48] sm:$0xff]
      %v315 = vld [vmem:[%s2 + $0x50] sm:$0xff]
      %v316 = vld [vmem:[%s2 + $0x58] sm:$0xff]
      %v317 = vld [vmem:[%s2 + $0x60] sm:$0xff]
      %v318 = vld [vmem:[%s2 + $0x68] sm:$0xff]
      %v319 = vld [vmem:[%s2 + $0x70] sm:$0xff]
      %v320 = vld [vmem:[%s2 + $0x78] sm:$0xff]
      %v321 = vpack.c.bf16 %v306, %v305
      %v322 = vpack.c.bf16 %v308, %v307
      %v323 = vpack.c.bf16 %v310, %v309
      %v324 = vpack.c.bf16 %v312, %v311
      %v325 = vpack.c.bf16 %v314, %v313
      %v326 = vpack.c.bf16 %v316, %v315
      %v327 = vpack.c.bf16 %v318, %v317
      %v328 = vpack.c.bf16 %v320, %v319
      %v329 = vld [vmem:[%s3] sm:$0xff]
      %v330 = vld [vmem:[%s3 + $0x8] sm:$0xff]
      %v331 = vld [vmem:[%s3 + $0x10] sm:$0xff]
      %v332 = vld [vmem:[%s3 + $0x18] sm:$0xff]
      %v333 = vpack.c.bf16 %v330, %v329
      %v334 = vpack.c.bf16 %v332, %v331
      %vm335 = vcmask 261120
      %v337 = vsel %vm335, %v261, 0
      %v340 = vsel %vm335, %v262, 0
      %v343 = vsel %vm335, %v263, 0
      %v346 = vsel %vm335, %v264, 0
      %348 = vmatprep.subr.bf16.mxu0 0
      %349 = vmatpush1.bf16.msra.mxu0 0
      %350 = vmatprep.subr.bf16.mxu0 0
      %351 = vmatpush1.bf16.msra.mxu0 0
      %352 = vmatprep.subr.bf16.mxu0 0
      %353 = vmatpush1.bf16.msra.mxu0 0
      %354 = vmatprep.subr.bf16.mxu0 0
      %355 = vmatpush1.bf16.msra.mxu0 0
      %356 = vmatprep.subr.bf16.mxu0 0
      %357 = vmatpush1.bf16.msra.mxu0 0
      %358 = vmatprep.subr.bf16.mxu0 0
      %359 = vmatpush1.bf16.msra.mxu0 0
      %360 = vmatprep.subr.bf16.mxu0 0
      %361 = vmatpush1.bf16.msra.mxu0 %v304
      %362 = vmatprep.subr.bf16.mxu0 0
      %363 = vmatpush1.bf16.msra.mxu0 %v303
      %364 = vmatprep.subr.bf16.mxu0 0
      %365 = vmatpush2.bf16.msra.mxu0 0
      %366 = vmatprep.subr.bf16.mxu0 0
      %367 = vmatpush2.bf16.msra.mxu0 0
      %368 = vmatprep.subr.bf16.mxu0 0
      %369 = vmatpush2.bf16.msra.mxu0 0
      %370 = vmatprep.subr.bf16.mxu0 0
      %371 = vmatpush2.bf16.msra.mxu0 0
      %372 = vmatprep.subr.bf16.mxu0 0
      %373 = vmatpush2.bf16.msra.mxu0 0
      %374 = vmatprep.subr.bf16.mxu0 0
      %375 = vmatpush2.bf16.msra.mxu0 0
      %376 = vmatprep.subr.bf16.mxu0 0
      %377 = vmatpush2.bf16.msra.mxu0 0
      %378 = vmatprep.subr.bf16.mxu0 0
      %379 = vmatpush2.bf16.msra.mxu0 0
      %380 = vmatprep.mubr.bf16.mxu0 0
      %381 = vmatmul.mubr.bf16.gmra.mxu0 %v337
      %v382 = vpop.f32.mrf.mxu0
      %v383 = vadd.f32 0.0, %v382
      %v384 = vpop.f32.mrf.mxu0
      %v385 = vpop.f32.mrf.mxu0
      %v386 = vadd.f32 0.0, %v385
      %v387 = vpop.f32.mrf.mxu0
      %388 = vmatprep.mubr.bf16.mxu0 0
      %389 = vmatmul.mubr.bf16.gmra.mxu0 %v340
      %v390 = vpop.f32.mrf.mxu0
      %v391 = vadd.f32 0.0, %v390
      %v392 = vpop.f32.mrf.mxu0
      %v393 = vpop.f32.mrf.mxu0
      %v394 = vadd.f32 0.0, %v393
      %v395 = vpop.f32.mrf.mxu0
      %396 = vmatprep.mubr.bf16.mxu0 0
      %397 = vmatmul.mubr.bf16.gmra.mxu0 %v343
      %v398 = vpop.f32.mrf.mxu0
      %v399 = vadd.f32 0.0, %v398
      %v400 = vpop.f32.mrf.mxu0
      %v401 = vpop.f32.mrf.mxu0
      %v402 = vadd.f32 0.0, %v401
      %v403 = vpop.f32.mrf.mxu0
      %404 = vmatprep.mubr.bf16.mxu0 0
      %405 = vmatmul.mubr.bf16.gmra.mxu0 %v346
      %v406 = vpop.f32.mrf.mxu0
      %v407 = vadd.f32 0.0, %v406
      %v408 = vpop.f32.mrf.mxu0
      %v409 = vpop.f32.mrf.mxu0
      %v410 = vadd.f32 0.0, %v409
      %v411 = vpop.f32.mrf.mxu0
      %412 = vdwg.mxu0
      %v414 = vsel %vm335, %v321, 0
      %v417 = vsel %vm335, %v322, 0
      %v420 = vsel %vm335, %v323, 0
      %v423 = vsel %vm335, %v324, 0
      %v426 = vsel %vm335, %v325, 0
      %v429 = vsel %vm335, %v326, 0
      %v432 = vsel %vm335, %v327, 0
      %v435 = vsel %vm335, %v328, 0
      %437 = vmatprep.subr.bf16.mxu0 0
      %438 = vmatpush1.bf16.msra.mxu0 0
      %439 = vmatprep.subr.bf16.mxu0 0
      %440 = vmatpush1.bf16.msra.mxu0 0
      %441 = vmatprep.subr.bf16.mxu0 0
      %442 = vmatpush1.bf16.msra.mxu0 0
      %443 = vmatprep.subr.bf16.mxu0 0
      %444 = vmatpush1.bf16.msra.mxu0 0
      %445 = vmatprep.subr.bf16.mxu0 0
      %446 = vmatpush1.bf16.msra.mxu0 0
      %447 = vmatprep.subr.bf16.mxu0 0
      %448 = vmatpush1.bf16.msra.mxu0 0
      %449 = vmatprep.subr.bf16.mxu0 0
      %450 = vmatpush1.bf16.msra.mxu0 %v298
      %451 = vmatprep.subr.bf16.mxu0 0
      %452 = vmatpush1.bf16.msra.mxu0 %v297
      %453 = vmatprep.subr.bf16.mxu0 0
      %454 = vmatpush2.bf16.msra.mxu0 0
      %455 = vmatprep.subr.bf16.mxu0 0
      %456 = vmatpush2.bf16.msra.mxu0 0
      %457 = vmatprep.subr.bf16.mxu0 0
      %458 = vmatpush2.bf16.msra.mxu0 0
      %459 = vmatprep.subr.bf16.mxu0 0
      %460 = vmatpush2.bf16.msra.mxu0 0
      %461 = vmatprep.subr.bf16.mxu0 0
      %462 = vmatpush2.bf16.msra.mxu0 0
      %463 = vmatprep.subr.bf16.mxu0 0
      %464 = vmatpush2.bf16.msra.mxu0 0
      %465 = vmatprep.subr.bf16.mxu0 0
      %466 = vmatpush2.bf16.msra.mxu0 0
      %467 = vmatprep.subr.bf16.mxu0 0
      %468 = vmatpush2.bf16.msra.mxu0 0
      %469 = vmatprep.mubr.bf16.mxu0 0
      %470 = vmatmul.mubr.bf16.gmra.mxu0 %v414
      %v471 = vpop.f32.mrf.mxu0
      %v472 = vadd.f32 0.0, %v471
      %v473 = vpop.f32.mrf.mxu0
      %v474 = vpop.f32.mrf.mxu0
      %v475 = vadd.f32 0.0, %v474
      %v476 = vpop.f32.mrf.mxu0
      %477 = vmatprep.mubr.bf16.mxu0 0
      %478 = vmatmul.mubr.bf16.gmra.mxu0 %v417
      %v479 = vpop.f32.mrf.mxu0
      %v480 = vadd.f32 0.0, %v479
      %v481 = vpop.f32.mrf.mxu0
      %v482 = vpop.f32.mrf.mxu0
      %v483 = vadd.f32 0.0, %v482
      %v484 = vpop.f32.mrf.mxu0
      %485 = vmatprep.mubr.bf16.mxu0 0
      %486 = vmatmul.mubr.bf16.gmra.mxu0 %v420
      %v487 = vpop.f32.mrf.mxu0
      %v488 = vadd.f32 0.0, %v487
      %v489 = vpop.f32.mrf.mxu0
      %v490 = vpop.f32.mrf.mxu0
      %v491 = vadd.f32 0.0, %v490
      %v492 = vpop.f32.mrf.mxu0
      %493 = vmatprep.mubr.bf16.mxu0 0
      %494 = vmatmul.mubr.bf16.gmra.mxu0 %v423
      %v495 = vpop.f32.mrf.mxu0
      %v496 = vadd.f32 0.0, %v495
      %v497 = vpop.f32.mrf.mxu0
      %v498 = vpop.f32.mrf.mxu0
      %v499 = vadd.f32 0.0, %v498
      %v500 = vpop.f32.mrf.mxu0
      %501 = vmatprep.mubr.bf16.mxu0 0
      %502 = vmatmul.mubr.bf16.gmra.mxu0 %v426
      %v503 = vpop.f32.mrf.mxu0
      %v504 = vadd.f32 0.0, %v503
      %v505 = vpop.f32.mrf.mxu0
      %v506 = vpop.f32.mrf.mxu0
      %v507 = vadd.f32 0.0, %v506
      %v508 = vpop.f32.mrf.mxu0
      %509 = vmatprep.mubr.bf16.mxu0 0
      %510 = vmatmul.mubr.bf16.gmra.mxu0 %v429
      %v511 = vpop.f32.mrf.mxu0
      %v512 = vadd.f32 0.0, %v511
      %v513 = vpop.f32.mrf.mxu0
      %v514 = vpop.f32.mrf.mxu0
      %v515 = vadd.f32 0.0, %v514
      %v516 = vpop.f32.mrf.mxu0
      %517 = vmatprep.mubr.bf16.mxu0 0
      %518 = vmatmul.mubr.bf16.gmra.mxu0 %v432
      %v519 = vpop.f32.mrf.mxu0
      %v520 = vadd.f32 0.0, %v519
      %v521 = vpop.f32.mrf.mxu0
      %v522 = vpop.f32.mrf.mxu0
      %v523 = vadd.f32 0.0, %v522
      %v524 = vpop.f32.mrf.mxu0
      %525 = vmatprep.mubr.bf16.mxu0 0
      %526 = vmatmul.mubr.bf16.gmra.mxu0 %v435
      %v527 = vpop.f32.mrf.mxu0
      %v528 = vadd.f32 0.0, %v527
      %v529 = vpop.f32.mrf.mxu0
      %v530 = vpop.f32.mrf.mxu0
      %v531 = vadd.f32 0.0, %v530
      %v532 = vpop.f32.mrf.mxu0
      %533 = vdwg.mxu0
      %534 = vmatprep.subr.bf16.mxu0 0
      %535 = vmatpush1.bf16.msra.mxu0 0
      %536 = vmatprep.subr.bf16.mxu0 0
      %537 = vmatpush1.bf16.msra.mxu0 0
      %538 = vmatprep.subr.bf16.mxu0 0
      %539 = vmatpush1.bf16.msra.mxu0 0
      %540 = vmatprep.subr.bf16.mxu0 0
      %541 = vmatpush1.bf16.msra.mxu0 0
      %542 = vmatprep.subr.bf16.mxu0 0
      %543 = vmatpush1.bf16.msra.mxu0 0
      %544 = vmatprep.subr.bf16.mxu0 0
      %545 = vmatpush1.bf16.msra.mxu0 0
      %546 = vmatprep.subr.bf16.mxu0 0
      %547 = vmatpush1.bf16.msra.mxu0 %v334
      %548 = vmatprep.subr.bf16.mxu0 0
      %549 = vmatpush1.bf16.msra.mxu0 %v333
      %550 = vmatprep.subr.bf16.mxu0 0
      %551 = vmatpush2.bf16.msra.mxu0 0
      %552 = vmatprep.subr.bf16.mxu0 0
      %553 = vmatpush2.bf16.msra.mxu0 0
      %554 = vmatprep.subr.bf16.mxu0 0
      %555 = vmatpush2.bf16.msra.mxu0 0
      %556 = vmatprep.subr.bf16.mxu0 0
      %557 = vmatpush2.bf16.msra.mxu0 0
      %558 = vmatprep.subr.bf16.mxu0 0
      %559 = vmatpush2.bf16.msra.mxu0 0
      %560 = vmatprep.subr.bf16.mxu0 0
      %561 = vmatpush2.bf16.msra.mxu0 0
      %562 = vmatprep.subr.bf16.mxu0 0
      %563 = vmatpush2.bf16.msra.mxu0 0
      %564 = vmatprep.subr.bf16.mxu0 0
      %565 = vmatpush2.bf16.msra.mxu0 0
      %566 = vmatprep.mubr.bf16.mxu0 0
      %567 = vmatmul.mubr.bf16.gmra.mxu0 %v337
      %v568 = vpop.f32.mrf.mxu0
      %v569 = vadd.f32 0.0, %v568
      %v570 = vpop.f32.mrf.mxu0
      %v571 = vpop.f32.mrf.mxu0
      %v572 = vadd.f32 0.0, %v571
      %v573 = vpop.f32.mrf.mxu0
      %574 = vmatprep.mubr.bf16.mxu0 0
      %575 = vmatmul.mubr.bf16.gmra.mxu0 %v340
      %v576 = vpop.f32.mrf.mxu0
      %v577 = vadd.f32 0.0, %v576
      %v578 = vpop.f32.mrf.mxu0
      %v579 = vpop.f32.mrf.mxu0
      %v580 = vadd.f32 0.0, %v579
      %v581 = vpop.f32.mrf.mxu0
      %582 = vmatprep.mubr.bf16.mxu0 0
      %583 = vmatmul.mubr.bf16.gmra.mxu0 %v343
      %v584 = vpop.f32.mrf.mxu0
      %v585 = vadd.f32 0.0, %v584
      %v586 = vpop.f32.mrf.mxu0
      %v587 = vpop.f32.mrf.mxu0
      %v588 = vadd.f32 0.0, %v587
      %v589 = vpop.f32.mrf.mxu0
      %590 = vmatprep.mubr.bf16.mxu0 0
      %591 = vmatmul.mubr.bf16.gmra.mxu0 %v346
      %v592 = vpop.f32.mrf.mxu0
      %v593 = vadd.f32 0.0, %v592
      %v594 = vpop.f32.mrf.mxu0
      %v595 = vpop.f32.mrf.mxu0
      %v596 = vadd.f32 0.0, %v595
      %v597 = vpop.f32.mrf.mxu0
      %598 = vdwg.mxu0
      %v599 = vpack.c.bf16 %v386, %v383
      %v600 = vpack.c.bf16 %v394, %v391
      %v601 = vpack.c.bf16 %v402, %v399
      %v602 = vpack.c.bf16 %v410, %v407
      %v603 = vpack.c.bf16 %v475, %v472
      %v604 = vpack.c.bf16 %v483, %v480
      %v605 = vpack.c.bf16 %v491, %v488
      %v606 = vpack.c.bf16 %v499, %v496
      %v607 = vpack.c.bf16 %v507, %v504
      %v608 = vpack.c.bf16 %v515, %v512
      %v609 = vpack.c.bf16 %v523, %v520
      %v610 = vpack.c.bf16 %v531, %v528
      %v611 = vpack.c.bf16 %v572, %v569
      %v612 = vpack.c.bf16 %v580, %v577
      %v613 = vpack.c.bf16 %v588, %v585
      %v614 = vpack.c.bf16 %v596, %v593
      %v616 = vsel %vm335, %v599, 0
      %v619 = vsel %vm335, %v600, 0
      %v622 = vsel %vm335, %v601, 0
      %v625 = vsel %vm335, %v602, 0
      %627 = vmatprep.subr.bf16.mxu0 0
      %628 = vmatpush1.bf16.msra.mxu0 0
      %629 = vmatprep.subr.bf16.mxu0 0
      %630 = vmatpush1.bf16.msra.mxu0 0
      %631 = vmatprep.subr.bf16.mxu0 0
      %632 = vmatpush1.bf16.msra.mxu0 0
      %633 = vmatprep.subr.bf16.mxu0 0
      %634 = vmatpush1.bf16.msra.mxu0 0
      %635 = vmatprep.subr.bf16.mxu0 0
      %636 = vmatpush1.bf16.msra.mxu0 0
      %637 = vmatprep.subr.bf16.mxu0 0
      %638 = vmatpush1.bf16.msra.mxu0 0
      %639 = vmatprep.subr.bf16.mxu0 0
      %640 = vmatpush1.bf16.msra.mxu0 %v604
      %641 = vmatprep.subr.bf16.mxu0 0
      %642 = vmatpush1.bf16.msra.mxu0 %v603
      %643 = vmatprep.subr.bf16.mxu0 0
      %644 = vmatpush2.bf16.msra.mxu0 0
      %645 = vmatprep.subr.bf16.mxu0 0
      %646 = vmatpush2.bf16.msra.mxu0 0
      %647 = vmatprep.subr.bf16.mxu0 0
      %648 = vmatpush2.bf16.msra.mxu0 0
      %649 = vmatprep.subr.bf16.mxu0 0
      %650 = vmatpush2.bf16.msra.mxu0 0
      %651 = vmatprep.subr.bf16.mxu0 0
      %652 = vmatpush2.bf16.msra.mxu0 0
      %653 = vmatprep.subr.bf16.mxu0 0
      %654 = vmatpush2.bf16.msra.mxu0 0
      %655 = vmatprep.subr.bf16.mxu0 0
      %656 = vmatpush2.bf16.msra.mxu0 0
      %657 = vmatprep.subr.bf16.mxu0 0
      %658 = vmatpush2.bf16.msra.mxu0 0
      %659 = vmatprep.mubr.bf16.mxu0 0
      %660 = vmatmul.mubr.bf16.gmra.mxu0 %v616
      %v661 = vpop.f32.mrf.mxu0
      %v662 = vadd.f32 0.0, %v661
      %v663 = vpop.f32.mrf.mxu0
      %v664 = vpop.f32.mrf.mxu0
      %v665 = vadd.f32 0.0, %v664
      %v666 = vpop.f32.mrf.mxu0
      %667 = vmatprep.mubr.bf16.mxu0 0
      %668 = vmatmul.mubr.bf16.gmra.mxu0 %v619
      %v669 = vpop.f32.mrf.mxu0
      %v670 = vadd.f32 0.0, %v669
      %v671 = vpop.f32.mrf.mxu0
      %v672 = vpop.f32.mrf.mxu0
      %v673 = vadd.f32 0.0, %v672
      %v674 = vpop.f32.mrf.mxu0
      %675 = vmatprep.mubr.bf16.mxu0 0
      %676 = vmatmul.mubr.bf16.gmra.mxu0 %v622
      %v677 = vpop.f32.mrf.mxu0
      %v678 = vadd.f32 0.0, %v677
      %v679 = vpop.f32.mrf.mxu0
      %v680 = vpop.f32.mrf.mxu0
      %v681 = vadd.f32 0.0, %v680
      %v682 = vpop.f32.mrf.mxu0
      %683 = vmatprep.mubr.bf16.mxu0 0
      %684 = vmatmul.mubr.bf16.gmra.mxu0 %v625
      %v685 = vpop.f32.mrf.mxu0
      %v686 = vadd.f32 0.0, %v685
      %v687 = vpop.f32.mrf.mxu0
      %v688 = vpop.f32.mrf.mxu0
      %v689 = vadd.f32 0.0, %v688
      %v690 = vpop.f32.mrf.mxu0
      %691 = vdwg.mxu0
      %696 = vrot.lane.b32.xlu0 %v599, 96
      %v697 = vpop.permute.xlu0 %696
      %698 = vrot.lane.b32.xlu0 %v600, 96
      %v699 = vpop.permute.xlu0 %698
      %700 = vrot.lane.b32.xlu0 %v601, 96
      %v701 = vpop.permute.xlu0 %700
      %702 = vrot.lane.b32.xlu0 %v602, 96
      %v703 = vpop.permute.xlu0 %702
      %v705 = vsel %vm335, %v697, 0
      %v708 = vsel %vm335, %v699, 0
      %v711 = vsel %vm335, %v701, 0
      %v714 = vsel %vm335, %v703, 0
      %716 = vmatprep.subr.bf16.mxu0 0
      %717 = vmatpush1.bf16.msra.mxu0 0
      %718 = vmatprep.subr.bf16.mxu0 0
      %719 = vmatpush1.bf16.msra.mxu0 0
      %720 = vmatprep.subr.bf16.mxu0 0
      %721 = vmatpush1.bf16.msra.mxu0 0
      %722 = vmatprep.subr.bf16.mxu0 0
      %723 = vmatpush1.bf16.msra.mxu0 0
      %724 = vmatprep.subr.bf16.mxu0 0
      %725 = vmatpush1.bf16.msra.mxu0 0
      %726 = vmatprep.subr.bf16.mxu0 0
      %727 = vmatpush1.bf16.msra.mxu0 0
      %728 = vmatprep.subr.bf16.mxu0 0
      %729 = vmatpush1.bf16.msra.mxu0 %v606
      %730 = vmatprep.subr.bf16.mxu0 0
      %731 = vmatpush1.bf16.msra.mxu0 %v605
      %732 = vmatprep.subr.bf16.mxu0 0
      %733 = vmatpush2.bf16.msra.mxu0 0
      %734 = vmatprep.subr.bf16.mxu0 0
      %735 = vmatpush2.bf16.msra.mxu0 0
      %736 = vmatprep.subr.bf16.mxu0 0
      %737 = vmatpush2.bf16.msra.mxu0 0
      %738 = vmatprep.subr.bf16.mxu0 0
      %739 = vmatpush2.bf16.msra.mxu0 0
      %740 = vmatprep.subr.bf16.mxu0 0
      %741 = vmatpush2.bf16.msra.mxu0 0
      %742 = vmatprep.subr.bf16.mxu0 0
      %743 = vmatpush2.bf16.msra.mxu0 0
      %744 = vmatprep.subr.bf16.mxu0 0
      %745 = vmatpush2.bf16.msra.mxu0 0
      %746 = vmatprep.subr.bf16.mxu0 0
      %747 = vmatpush2.bf16.msra.mxu0 0
      %748 = vmatprep.mubr.bf16.mxu0 0
      %749 = vmatmul.mubr.bf16.gmra.mxu0 %v705
      %v750 = vpop.f32.mrf.mxu0
      %v751 = vadd.f32 0.0, %v750
      %v752 = vpop.f32.mrf.mxu0
      %v753 = vpop.f32.mrf.mxu0
      %v754 = vadd.f32 0.0, %v753
      %v755 = vpop.f32.mrf.mxu0
      %756 = vmatprep.mubr.bf16.mxu0 0
      %757 = vmatmul.mubr.bf16.gmra.mxu0 %v708
      %v758 = vpop.f32.mrf.mxu0
      %v759 = vadd.f32 0.0, %v758
      %v760 = vpop.f32.mrf.mxu0
      %v761 = vpop.f32.mrf.mxu0
      %v762 = vadd.f32 0.0, %v761
      %v763 = vpop.f32.mrf.mxu0
      %764 = vmatprep.mubr.bf16.mxu0 0
      %765 = vmatmul.mubr.bf16.gmra.mxu0 %v711
      %v766 = vpop.f32.mrf.mxu0
      %v767 = vadd.f32 0.0, %v766
      %v768 = vpop.f32.mrf.mxu0
      %v769 = vpop.f32.mrf.mxu0
      %v770 = vadd.f32 0.0, %v769
      %v771 = vpop.f32.mrf.mxu0
      %772 = vmatprep.mubr.bf16.mxu0 0
      %773 = vmatmul.mubr.bf16.gmra.mxu0 %v714
      %v774 = vpop.f32.mrf.mxu0
      %v775 = vadd.f32 0.0, %v774
      %v776 = vpop.f32.mrf.mxu0
      %v777 = vpop.f32.mrf.mxu0
      %v778 = vadd.f32 0.0, %v777
      %v779 = vpop.f32.mrf.mxu0
      %780 = vdwg.mxu0
      %781 = vrot.lane.b32.xlu0 %v599, 64
      %v782 = vpop.permute.xlu0 %781
      %783 = vrot.lane.b32.xlu0 %v600, 64
      %v784 = vpop.permute.xlu0 %783
      %785 = vrot.lane.b32.xlu0 %v601, 64
      %v786 = vpop.permute.xlu0 %785
      %787 = vrot.lane.b32.xlu0 %v602, 64
      %v788 = vpop.permute.xlu0 %787
      %v790 = vsel %vm335, %v782, 0
      %v793 = vsel %vm335, %v784, 0
      %v796 = vsel %vm335, %v786, 0
      %v799 = vsel %vm335, %v788, 0
      %801 = vmatprep.subr.bf16.mxu0 0
      %802 = vmatpush1.bf16.msra.mxu0 0
      %803 = vmatprep.subr.bf16.mxu0 0
      %804 = vmatpush1.bf16.msra.mxu0 0
      %805 = vmatprep.subr.bf16.mxu0 0
      %806 = vmatpush1.bf16.msra.mxu0 0
      %807 = vmatprep.subr.bf16.mxu0 0
      %808 = vmatpush1.bf16.msra.mxu0 0
      %809 = vmatprep.subr.bf16.mxu0 0
      %810 = vmatpush1.bf16.msra.mxu0 0
      %811 = vmatprep.subr.bf16.mxu0 0
      %812 = vmatpush1.bf16.msra.mxu0 0
      %813 = vmatprep.subr.bf16.mxu0 0
      %814 = vmatpush1.bf16.msra.mxu0 %v608
      %815 = vmatprep.subr.bf16.mxu0 0
      %816 = vmatpush1.bf16.msra.mxu0 %v607
      %817 = vmatprep.subr.bf16.mxu0 0
      %818 = vmatpush2.bf16.msra.mxu0 0
      %819 = vmatprep.subr.bf16.mxu0 0
      %820 = vmatpush2.bf16.msra.mxu0 0
      %821 = vmatprep.subr.bf16.mxu0 0
      %822 = vmatpush2.bf16.msra.mxu0 0
      %823 = vmatprep.subr.bf16.mxu0 0
      %824 = vmatpush2.bf16.msra.mxu0 0
      %825 = vmatprep.subr.bf16.mxu0 0
      %826 = vmatpush2.bf16.msra.mxu0 0
      %827 = vmatprep.subr.bf16.mxu0 0
      %828 = vmatpush2.bf16.msra.mxu0 0
      %829 = vmatprep.subr.bf16.mxu0 0
      %830 = vmatpush2.bf16.msra.mxu0 0
      %831 = vmatprep.subr.bf16.mxu0 0
      %832 = vmatpush2.bf16.msra.mxu0 0
      %833 = vmatprep.mubr.bf16.mxu0 0
      %834 = vmatmul.mubr.bf16.gmra.mxu0 %v790
      %v835 = vpop.f32.mrf.mxu0
      %v836 = vadd.f32 0.0, %v835
      %v837 = vpop.f32.mrf.mxu0
      %v838 = vpop.f32.mrf.mxu0
      %v839 = vadd.f32 0.0, %v838
      %v840 = vpop.f32.mrf.mxu0
      %841 = vmatprep.mubr.bf16.mxu0 0
      %842 = vmatmul.mubr.bf16.gmra.mxu0 %v793
      %v843 = vpop.f32.mrf.mxu0
      %v844 = vadd.f32 0.0, %v843
      %v845 = vpop.f32.mrf.mxu0
      %v846 = vpop.f32.mrf.mxu0
      %v847 = vadd.f32 0.0, %v846
      %v848 = vpop.f32.mrf.mxu0
      %849 = vmatprep.mubr.bf16.mxu0 0
      %850 = vmatmul.mubr.bf16.gmra.mxu0 %v796
      %v851 = vpop.f32.mrf.mxu0
      %v852 = vadd.f32 0.0, %v851
      %v853 = vpop.f32.mrf.mxu0
      %v854 = vpop.f32.mrf.mxu0
      %v855 = vadd.f32 0.0, %v854
      %v856 = vpop.f32.mrf.mxu0
      %857 = vmatprep.mubr.bf16.mxu0 0
      %858 = vmatmul.mubr.bf16.gmra.mxu0 %v799
      %v859 = vpop.f32.mrf.mxu0
      %v860 = vadd.f32 0.0, %v859
      %v861 = vpop.f32.mrf.mxu0
      %v862 = vpop.f32.mrf.mxu0
      %v863 = vadd.f32 0.0, %v862
      %v864 = vpop.f32.mrf.mxu0
      %865 = vdwg.mxu0
      %866 = vrot.lane.b32.xlu0 %v599, 32
      %v867 = vpop.permute.xlu0 %866
      %868 = vrot.lane.b32.xlu0 %v600, 32
      %v869 = vpop.permute.xlu0 %868
      %870 = vrot.lane.b32.xlu0 %v601, 32
      %v871 = vpop.permute.xlu0 %870
      %872 = vrot.lane.b32.xlu0 %v602, 32
      %v873 = vpop.permute.xlu0 %872
      %v875 = vsel %vm335, %v867, 0
      %v878 = vsel %vm335, %v869, 0
      %v881 = vsel %vm335, %v871, 0
      %v884 = vsel %vm335, %v873, 0
      %886 = vmatprep.subr.bf16.mxu0 0
      %887 = vmatpush1.bf16.msra.mxu0 0
      %888 = vmatprep.subr.bf16.mxu0 0
      %889 = vmatpush1.bf16.msra.mxu0 0
      %890 = vmatprep.subr.bf16.mxu0 0
      %891 = vmatpush1.bf16.msra.mxu0 0
      %892 = vmatprep.subr.bf16.mxu0 0
      %893 = vmatpush1.bf16.msra.mxu0 0
      %894 = vmatprep.subr.bf16.mxu0 0
      %895 = vmatpush1.bf16.msra.mxu0 0
      %896 = vmatprep.subr.bf16.mxu0 0
      %897 = vmatpush1.bf16.msra.mxu0 0
      %898 = vmatprep.subr.bf16.mxu0 0
      %899 = vmatpush1.bf16.msra.mxu0 %v610
      %900 = vmatprep.subr.bf16.mxu0 0
      %901 = vmatpush1.bf16.msra.mxu0 %v609
      %902 = vmatprep.subr.bf16.mxu0 0
      %903 = vmatpush2.bf16.msra.mxu0 0
      %904 = vmatprep.subr.bf16.mxu0 0
      %905 = vmatpush2.bf16.msra.mxu0 0
      %906 = vmatprep.subr.bf16.mxu0 0
      %907 = vmatpush2.bf16.msra.mxu0 0
      %908 = vmatprep.subr.bf16.mxu0 0
      %909 = vmatpush2.bf16.msra.mxu0 0
      %910 = vmatprep.subr.bf16.mxu0 0
      %911 = vmatpush2.bf16.msra.mxu0 0
      %912 = vmatprep.subr.bf16.mxu0 0
      %913 = vmatpush2.bf16.msra.mxu0 0
      %914 = vmatprep.subr.bf16.mxu0 0
      %915 = vmatpush2.bf16.msra.mxu0 0
      %916 = vmatprep.subr.bf16.mxu0 0
      %917 = vmatpush2.bf16.msra.mxu0 0
      %918 = vmatprep.mubr.bf16.mxu0 0
      %919 = vmatmul.mubr.bf16.gmra.mxu0 %v875
      %v920 = vpop.f32.mrf.mxu0
      %v921 = vadd.f32 0.0, %v920
      %v922 = vpop.f32.mrf.mxu0
      %v923 = vpop.f32.mrf.mxu0
      %v924 = vadd.f32 0.0, %v923
      %v925 = vpop.f32.mrf.mxu0
      %926 = vmatprep.mubr.bf16.mxu0 0
      %927 = vmatmul.mubr.bf16.gmra.mxu0 %v878
      %v928 = vpop.f32.mrf.mxu0
      %v929 = vadd.f32 0.0, %v928
      %v930 = vpop.f32.mrf.mxu0
      %v931 = vpop.f32.mrf.mxu0
      %v932 = vadd.f32 0.0, %v931
      %v933 = vpop.f32.mrf.mxu0
      %934 = vmatprep.mubr.bf16.mxu0 0
      %935 = vmatmul.mubr.bf16.gmra.mxu0 %v881
      %v936 = vpop.f32.mrf.mxu0
      %v937 = vadd.f32 0.0, %v936
      %v938 = vpop.f32.mrf.mxu0
      %v939 = vpop.f32.mrf.mxu0
      %v940 = vadd.f32 0.0, %v939
      %v941 = vpop.f32.mrf.mxu0
      %942 = vmatprep.mubr.bf16.mxu0 0
      %943 = vmatmul.mubr.bf16.gmra.mxu0 %v884
      %v944 = vpop.f32.mrf.mxu0
      %v945 = vadd.f32 0.0, %v944
      %v946 = vpop.f32.mrf.mxu0
      %v947 = vpop.f32.mrf.mxu0
      %v948 = vadd.f32 0.0, %v947
      %v949 = vpop.f32.mrf.mxu0
      %950 = vdwg.mxu0
      %vm951 = vcmask 523264
      %v952 = vsel %vm951, %v662, -inf
      %953 = vmax.xlane.f32.xlu0 %v952
      %v954 = vpop.xlane.xlu0 %953
      %v955 = vsel %vm951, %v665, -inf
      %956 = vmax.xlane.f32.xlu0 %v955
      %v957 = vpop.xlane.xlu0 %956
      %v958 = vsel %vm951, %v670, -inf
      %959 = vmax.xlane.f32.xlu0 %v958
      %v960 = vpop.xlane.xlu0 %959
      %v961 = vsel %vm951, %v673, -inf
      %962 = vmax.xlane.f32.xlu0 %v961
      %v963 = vpop.xlane.xlu0 %962
      %v964 = vsel %vm951, %v678, -inf
      %965 = vmax.xlane.f32.xlu0 %v964
      %v966 = vpop.xlane.xlu0 %965
      %v967 = vsel %vm951, %v681, -inf
      %968 = vmax.xlane.f32.xlu0 %v967
      %v969 = vpop.xlane.xlu0 %968
      %v970 = vsel %vm951, %v686, -inf
      %971 = vmax.xlane.f32.xlu0 %v970
      %v972 = vpop.xlane.xlu0 %971
      %v973 = vsel %vm951, %v689, -inf
      %974 = vmax.xlane.f32.xlu0 %v973
      %v975 = vpop.xlane.xlu0 %974
      %v976 = vsel %vm951, %v751, -inf
      %977 = vmax.xlane.f32.xlu0 %v976
      %v978 = vpop.xlane.xlu0 %977
      %v979 = vsel %vm951, %v754, -inf
      %980 = vmax.xlane.f32.xlu0 %v979
      %v981 = vpop.xlane.xlu0 %980
      %v982 = vsel %vm951, %v759, -inf
      %983 = vmax.xlane.f32.xlu0 %v982
      %v984 = vpop.xlane.xlu0 %983
      %v985 = vsel %vm951, %v762, -inf
      %986 = vmax.xlane.f32.xlu0 %v985
      %v987 = vpop.xlane.xlu0 %986
      %v988 = vsel %vm951, %v767, -inf
      %989 = vmax.xlane.f32.xlu0 %v988
      %v990 = vpop.xlane.xlu0 %989
      %v991 = vsel %vm951, %v770, -inf
      %992 = vmax.xlane.f32.xlu0 %v991
      %v993 = vpop.xlane.xlu0 %992
      %v994 = vsel %vm951, %v775, -inf
      %995 = vmax.xlane.f32.xlu0 %v994
      %v996 = vpop.xlane.xlu0 %995
      %v997 = vsel %vm951, %v778, -inf
      %998 = vmax.xlane.f32.xlu0 %v997
      %v999 = vpop.xlane.xlu0 %998
      %v1000 = vsel %vm951, %v836, -inf
      %1001 = vmax.xlane.f32.xlu0 %v1000
      %v1002 = vpop.xlane.xlu0 %1001
      %v1003 = vsel %vm951, %v839, -inf
      %1004 = vmax.xlane.f32.xlu0 %v1003
      %v1005 = vpop.xlane.xlu0 %1004
      %v1006 = vsel %vm951, %v844, -inf
      %1007 = vmax.xlane.f32.xlu0 %v1006
      %v1008 = vpop.xlane.xlu0 %1007
      %v1009 = vsel %vm951, %v847, -inf
      %1010 = vmax.xlane.f32.xlu0 %v1009
      %v1011 = vpop.xlane.xlu0 %1010
      %v1012 = vsel %vm951, %v852, -inf
      %1013 = vmax.xlane.f32.xlu0 %v1012
      %v1014 = vpop.xlane.xlu0 %1013
      %v1015 = vsel %vm951, %v855, -inf
      %1016 = vmax.xlane.f32.xlu0 %v1015
      %v1017 = vpop.xlane.xlu0 %1016
      %v1018 = vsel %vm951, %v860, -inf
      %1019 = vmax.xlane.f32.xlu0 %v1018
      %v1020 = vpop.xlane.xlu0 %1019
      %v1021 = vsel %vm951, %v863, -inf
      %1022 = vmax.xlane.f32.xlu0 %v1021
      %v1023 = vpop.xlane.xlu0 %1022
      %v1024 = vsel %vm951, %v921, -inf
      %1025 = vmax.xlane.f32.xlu0 %v1024
      %v1026 = vpop.xlane.xlu0 %1025
      %v1027 = vsel %vm951, %v924, -inf
      %1028 = vmax.xlane.f32.xlu0 %v1027
      %v1029 = vpop.xlane.xlu0 %1028
      %v1030 = vsel %vm951, %v929, -inf
      %1031 = vmax.xlane.f32.xlu0 %v1030
      %v1032 = vpop.xlane.xlu0 %1031
      %v1033 = vsel %vm951, %v932, -inf
      %1034 = vmax.xlane.f32.xlu0 %v1033
      %v1035 = vpop.xlane.xlu0 %1034
      %v1036 = vsel %vm951, %v937, -inf
      %1037 = vmax.xlane.f32.xlu0 %v1036
      %v1038 = vpop.xlane.xlu0 %1037
      %v1039 = vsel %vm951, %v940, -inf
      %1040 = vmax.xlane.f32.xlu0 %v1039
      %v1041 = vpop.xlane.xlu0 %1040
      %v1042 = vsel %vm951, %v945, -inf
      %1043 = vmax.xlane.f32.xlu0 %v1042
      %v1044 = vpop.xlane.xlu0 %1043
      %v1045 = vsel %vm951, %v948, -inf
      %1046 = vmax.xlane.f32.xlu0 %v1045
      %v1047 = vpop.xlane.xlu0 %1046
      %v1048 = vsub.f32 %v662, %v954
      %v1049 = vsub.f32 %v665, %v957
      %v1050 = vsub.f32 %v670, %v960
      %v1051 = vsub.f32 %v673, %v963
      %v1052 = vsub.f32 %v678, %v966
      %v1053 = vsub.f32 %v681, %v969
      %v1054 = vsub.f32 %v686, %v972
      %v1055 = vsub.f32 %v689, %v975
      %v1056 = vsub.f32 %v751, %v978
      %v1057 = vsub.f32 %v754, %v981
      %v1058 = vsub.f32 %v759, %v984
      %v1059 = vsub.f32 %v762, %v987
      %v1060 = vsub.f32 %v767, %v990
      %v1061 = vsub.f32 %v770, %v993
      %v1062 = vsub.f32 %v775, %v996
      %v1063 = vsub.f32 %v778, %v999
      %v1064 = vsub.f32 %v836, %v1002
      %v1065 = vsub.f32 %v839, %v1005
      %v1066 = vsub.f32 %v844, %v1008
      %v1067 = vsub.f32 %v847, %v1011
      %v1068 = vsub.f32 %v852, %v1014
      %v1069 = vsub.f32 %v855, %v1017
      %v1070 = vsub.f32 %v860, %v1020
      %v1071 = vsub.f32 %v863, %v1023
      %v1072 = vsub.f32 %v921, %v1026
      %v1073 = vsub.f32 %v924, %v1029
      %v1074 = vsub.f32 %v929, %v1032
      %v1075 = vsub.f32 %v932, %v1035
      %v1076 = vsub.f32 %v937, %v1038
      %v1077 = vsub.f32 %v940, %v1041
      %v1078 = vsub.f32 %v945, %v1044
      %v1079 = vsub.f32 %v948, %v1047
      %v1080 = vmul.f32 %v1048, 1.442695
      %v1081 = vpow.pop %v1080
      %v1082 = vmul.f32 %v1049, 1.442695
      %v1083 = vpow.pop %v1082
      %v1084 = vmul.f32 %v1050, 1.442695
      %v1085 = vpow.pop %v1084
      %v1086 = vmul.f32 %v1051, 1.442695
      %v1087 = vpow.pop %v1086
      %v1088 = vmul.f32 %v1052, 1.442695
      %v1089 = vpow.pop %v1088
      %v1090 = vmul.f32 %v1053, 1.442695
      %v1091 = vpow.pop %v1090
      %v1092 = vmul.f32 %v1054, 1.442695
      %v1093 = vpow.pop %v1092
      %v1094 = vmul.f32 %v1055, 1.442695
      %v1095 = vpow.pop %v1094
      %v1096 = vmul.f32 %v1056, 1.442695
      %v1097 = vpow.pop %v1096
      %v1098 = vmul.f32 %v1057, 1.442695
      %v1099 = vpow.pop %v1098
      %v1100 = vmul.f32 %v1058, 1.442695
      %v1101 = vpow.pop %v1100
      %v1102 = vmul.f32 %v1059, 1.442695
      %v1103 = vpow.pop %v1102
      %v1104 = vmul.f32 %v1060, 1.442695
      %v1105 = vpow.pop %v1104
      %v1106 = vmul.f32 %v1061, 1.442695
      %v1107 = vpow.pop %v1106
      %v1108 = vmul.f32 %v1062, 1.442695
      %v1109 = vpow.pop %v1108
      %v1110 = vmul.f32 %v1063, 1.442695
      %v1111 = vpow.pop %v1110
      %v1112 = vmul.f32 %v1064, 1.442695
      %v1113 = vpow.pop %v1112
      %v1114 = vmul.f32 %v1065, 1.442695
      %v1115 = vpow.pop %v1114
      %v1116 = vmul.f32 %v1066, 1.442695
      %v1117 = vpow.pop %v1116
      %v1118 = vmul.f32 %v1067, 1.442695
      %v1119 = vpow.pop %v1118
      %v1120 = vmul.f32 %v1068, 1.442695
      %v1121 = vpow.pop %v1120
      %v1122 = vmul.f32 %v1069, 1.442695
      %v1123 = vpow.pop %v1122
      %v1124 = vmul.f32 %v1070, 1.442695
      %v1125 = vpow.pop %v1124
      %v1126 = vmul.f32 %v1071, 1.442695
      %v1127 = vpow.pop %v1126
      %v1128 = vmul.f32 %v1072, 1.442695
      %v1129 = vpow.pop %v1128
      %v1130 = vmul.f32 %v1073, 1.442695
      %v1131 = vpow.pop %v1130
      %v1132 = vmul.f32 %v1074, 1.442695
      %v1133 = vpow.pop %v1132
      %v1134 = vmul.f32 %v1075, 1.442695
      %v1135 = vpow.pop %v1134
      %v1136 = vmul.f32 %v1076, 1.442695
      %v1137 = vpow.pop %v1136
      %v1138 = vmul.f32 %v1077, 1.442695
      %v1139 = vpow.pop %v1138
      %v1140 = vmul.f32 %v1078, 1.442695
      %v1141 = vpow.pop %v1140
      %v1142 = vmul.f32 %v1079, 1.442695
      %v1143 = vpow.pop %v1142
      %v1144 = vsel %vm951, %v1081, 0.0
      %1145 = vadd.xlane.f32.xlu0 %v1144
      %v1146 = vpop.xlane.xlu0 %1145
      %v1147 = vsel %vm951, %v1083, 0.0
      %1148 = vadd.xlane.f32.xlu0 %v1147
      %v1149 = vpop.xlane.xlu0 %1148
      %v1150 = vsel %vm951, %v1085, 0.0
      %1151 = vadd.xlane.f32.xlu0 %v1150
      %v1152 = vpop.xlane.xlu0 %1151
      %v1153 = vsel %vm951, %v1087, 0.0
      %1154 = vadd.xlane.f32.xlu0 %v1153
      %v1155 = vpop.xlane.xlu0 %1154
      %v1156 = vsel %vm951, %v1089, 0.0
      %1157 = vadd.xlane.f32.xlu0 %v1156
      %v1158 = vpop.xlane.xlu0 %1157
      %v1159 = vsel %vm951, %v1091, 0.0
      %1160 = vadd.xlane.f32.xlu0 %v1159
      %v1161 = vpop.xlane.xlu0 %1160
      %v1162 = vsel %vm951, %v1093, 0.0
      %1163 = vadd.xlane.f32.xlu0 %v1162
      %v1164 = vpop.xlane.xlu0 %1163
      %v1165 = vsel %vm951, %v1095, 0.0
      %1166 = vadd.xlane.f32.xlu0 %v1165
      %v1167 = vpop.xlane.xlu0 %1166
      %v1168 = vsel %vm951, %v1097, 0.0
      %1169 = vadd.xlane.f32.xlu0 %v1168
      %v1170 = vpop.xlane.xlu0 %1169
      %v1171 = vsel %vm951, %v1099, 0.0
      %1172 = vadd.xlane.f32.xlu0 %v1171
      %v1173 = vpop.xlane.xlu0 %1172
      %v1174 = vsel %vm951, %v1101, 0.0
      %1175 = vadd.xlane.f32.xlu0 %v1174
      %v1176 = vpop.xlane.xlu0 %1175
      %v1177 = vsel %vm951, %v1103, 0.0
      %1178 = vadd.xlane.f32.xlu0 %v1177
      %v1179 = vpop.xlane.xlu0 %1178
      %v1180 = vsel %vm951, %v1105, 0.0
      %1181 = vadd.xlane.f32.xlu0 %v1180
      %v1182 = vpop.xlane.xlu0 %1181
      %v1183 = vsel %vm951, %v1107, 0.0
      %1184 = vadd.xlane.f32.xlu0 %v1183
      %v1185 = vpop.xlane.xlu0 %1184
      %v1186 = vsel %vm951, %v1109, 0.0
      %1187 = vadd.xlane.f32.xlu0 %v1186
      %v1188 = vpop.xlane.xlu0 %1187
      %v1189 = vsel %vm951, %v1111, 0.0
      %1190 = vadd.xlane.f32.xlu0 %v1189
      %v1191 = vpop.xlane.xlu0 %1190
      %v1192 = vsel %vm951, %v1113, 0.0
      %1193 = vadd.xlane.f32.xlu0 %v1192
      %v1194 = vpop.xlane.xlu0 %1193
      %v1195 = vsel %vm951, %v1115, 0.0
      %1196 = vadd.xlane.f32.xlu0 %v1195
      %v1197 = vpop.xlane.xlu0 %1196
      %v1198 = vsel %vm951, %v1117, 0.0
      %1199 = vadd.xlane.f32.xlu0 %v1198
      %v1200 = vpop.xlane.xlu0 %1199
      %v1201 = vsel %vm951, %v1119, 0.0
      %1202 = vadd.xlane.f32.xlu0 %v1201
      %v1203 = vpop.xlane.xlu0 %1202
      %v1204 = vsel %vm951, %v1121, 0.0
      %1205 = vadd.xlane.f32.xlu0 %v1204
      %v1206 = vpop.xlane.xlu0 %1205
      %v1207 = vsel %vm951, %v1123, 0.0
      %1208 = vadd.xlane.f32.xlu0 %v1207
      %v1209 = vpop.xlane.xlu0 %1208
      %v1210 = vsel %vm951, %v1125, 0.0
      %1211 = vadd.xlane.f32.xlu0 %v1210
      %v1212 = vpop.xlane.xlu0 %1211
      %v1213 = vsel %vm951, %v1127, 0.0
      %1214 = vadd.xlane.f32.xlu0 %v1213
      %v1215 = vpop.xlane.xlu0 %1214
      %v1216 = vsel %vm951, %v1129, 0.0
      %1217 = vadd.xlane.f32.xlu0 %v1216
      %v1218 = vpop.xlane.xlu0 %1217
      %v1219 = vsel %vm951, %v1131, 0.0
      %1220 = vadd.xlane.f32.xlu0 %v1219
      %v1221 = vpop.xlane.xlu0 %1220
      %v1222 = vsel %vm951, %v1133, 0.0
      %1223 = vadd.xlane.f32.xlu0 %v1222
      %v1224 = vpop.xlane.xlu0 %1223
      %v1225 = vsel %vm951, %v1135, 0.0
      %1226 = vadd.xlane.f32.xlu0 %v1225
      %v1227 = vpop.xlane.xlu0 %1226
      %v1228 = vsel %vm951, %v1137, 0.0
      %1229 = vadd.xlane.f32.xlu0 %v1228
      %v1230 = vpop.xlane.xlu0 %1229
      %v1231 = vsel %vm951, %v1139, 0.0
      %1232 = vadd.xlane.f32.xlu0 %v1231
      %v1233 = vpop.xlane.xlu0 %1232
      %v1234 = vsel %vm951, %v1141, 0.0
      %1235 = vadd.xlane.f32.xlu0 %v1234
      %v1236 = vpop.xlane.xlu0 %1235
      %v1237 = vsel %vm951, %v1143, 0.0
      %1238 = vadd.xlane.f32.xlu0 %v1237
      %v1239 = vpop.xlane.xlu0 %1238
      %v1240 = vrcp.pop %v1146
      %v1241 = vrcp.pop %v1149
      %v1242 = vrcp.pop %v1152
      %v1243 = vrcp.pop %v1155
      %v1244 = vrcp.pop %v1158
      %v1245 = vrcp.pop %v1161
      %v1246 = vrcp.pop %v1164
      %v1247 = vrcp.pop %v1167
      %v1248 = vrcp.pop %v1170
      %v1249 = vrcp.pop %v1173
      %v1250 = vrcp.pop %v1176
      %v1251 = vrcp.pop %v1179
      %v1252 = vrcp.pop %v1182
      %v1253 = vrcp.pop %v1185
      %v1254 = vrcp.pop %v1188
      %v1255 = vrcp.pop %v1191
      %v1256 = vrcp.pop %v1194
      %v1257 = vrcp.pop %v1197
      %v1258 = vrcp.pop %v1200
      %v1259 = vrcp.pop %v1203
      %v1260 = vrcp.pop %v1206
      %v1261 = vrcp.pop %v1209
      %v1262 = vrcp.pop %v1212
      %v1263 = vrcp.pop %v1215
      %v1264 = vrcp.pop %v1218
      %v1265 = vrcp.pop %v1221
      %v1266 = vrcp.pop %v1224
      %v1267 = vrcp.pop %v1227
      %v1268 = vrcp.pop %v1230
      %v1269 = vrcp.pop %v1233
      %v1270 = vrcp.pop %v1236
      %v1271 = vrcp.pop %v1239
      %v1272 = vpack.c.bf16 %v1083, %v1081
      %v1273 = vpack.c.bf16 %v1087, %v1085
      %v1274 = vpack.c.bf16 %v1091, %v1089
      %v1275 = vpack.c.bf16 %v1095, %v1093
      %v1276 = vpack.c.bf16 %v1099, %v1097
      %v1277 = vpack.c.bf16 %v1103, %v1101
      %v1278 = vpack.c.bf16 %v1107, %v1105
      %v1279 = vpack.c.bf16 %v1111, %v1109
      %v1280 = vpack.c.bf16 %v1115, %v1113
      %v1281 = vpack.c.bf16 %v1119, %v1117
      %v1282 = vpack.c.bf16 %v1123, %v1121
      %v1283 = vpack.c.bf16 %v1127, %v1125
      %v1284 = vpack.c.bf16 %v1131, %v1129
      %v1285 = vpack.c.bf16 %v1135, %v1133
      %v1286 = vpack.c.bf16 %v1139, %v1137
      %v1287 = vpack.c.bf16 %v1143, %v1141
      %v1288 = vld [vmem:[%s4] sm:$0xff]
      %v1289 = vld [vmem:[%s4 + $0x8] sm:$0xff]
      %v1290 = vld [vmem:[%s4 + $0x10] sm:$0xff]
      %v1291 = vld [vmem:[%s4 + $0x18] sm:$0xff]
      %v1292 = vld [vmem:[%s4 + $0x20] sm:$0xff]
      %v1293 = vld [vmem:[%s4 + $0x28] sm:$0xff]
      %v1294 = vld [vmem:[%s4 + $0x30] sm:$0xff]
      %v1295 = vld [vmem:[%s4 + $0x38] sm:$0xff]
      %v1296 = vld [vmem:[%s4 + $0x40] sm:$0xff]
      %v1297 = vld [vmem:[%s4 + $0x48] sm:$0xff]
      %v1298 = vld [vmem:[%s4 + $0x50] sm:$0xff]
      %v1299 = vld [vmem:[%s4 + $0x58] sm:$0xff]
      %v1300 = vld [vmem:[%s4 + $0x60] sm:$0xff]
      %v1301 = vld [vmem:[%s4 + $0x68] sm:$0xff]
      %v1302 = vld [vmem:[%s4 + $0x70] sm:$0xff]
      %v1303 = vld [vmem:[%s4 + $0x78] sm:$0xff]
      %v1304 = vld [vmem:[%s5] sm:$0x1]
      %v1306 = vsel %vm951, %v1272, 0
      %v1309 = vsel %vm951, %v1273, 0
      %v1312 = vsel %vm951, %v1274, 0
      %v1315 = vsel %vm951, %v1275, 0
      %1317 = vmatprep.subr.bf16.mxu0 0
      %1318 = vmatpush1.bf16.msra.mxu0 0
      %1319 = vmatprep.subr.bf16.mxu0 0
      %1320 = vmatpush1.bf16.msra.mxu0 0
      %1321 = vmatprep.subr.bf16.mxu0 0
      %1322 = vmatpush1.bf16.msra.mxu0 0
      %1323 = vmatprep.subr.bf16.mxu0 0
      %1324 = vmatpush1.bf16.msra.mxu0 0
      %1325 = vmatprep.subr.bf16.mxu0 0
      %1326 = vmatpush1.bf16.msra.mxu0 %v614
      %1327 = vmatprep.subr.bf16.mxu0 0
      %1328 = vmatpush1.bf16.msra.mxu0 %v613
      %1329 = vmatprep.subr.bf16.mxu0 0
      %1330 = vmatpush1.bf16.msra.mxu0 %v612
      %1331 = vmatprep.subr.bf16.mxu0 0
      %1332 = vmatpush1.bf16.msra.mxu0 %v611
      %1333 = vmatprep.subr.bf16.mxu0 0
      %1334 = vmatpush2.bf16.msra.mxu0 0
      %1335 = vmatprep.subr.bf16.mxu0 0
      %1336 = vmatpush2.bf16.msra.mxu0 0
      %1337 = vmatprep.subr.bf16.mxu0 0
      %1338 = vmatpush2.bf16.msra.mxu0 0
      %1339 = vmatprep.subr.bf16.mxu0 0
      %1340 = vmatpush2.bf16.msra.mxu0 0
      %1341 = vmatprep.subr.bf16.mxu0 0
      %1342 = vmatpush2.bf16.msra.mxu0 0
      %1343 = vmatprep.subr.bf16.mxu0 0
      %1344 = vmatpush2.bf16.msra.mxu0 0
      %1345 = vmatprep.subr.bf16.mxu0 0
      %1346 = vmatpush2.bf16.msra.mxu0 0
      %1347 = vmatprep.subr.bf16.mxu0 0
      %1348 = vmatpush2.bf16.msra.mxu0 0
      %1349 = vmatprep.mubr.bf16.mxu0 0
      %1350 = vmatmul.mubr.bf16.gmra.mxu0 %v1306
      %v1351 = vpop.f32.mrf.mxu0
      %v1352 = vadd.f32 0.0, %v1351
      %v1353 = vpop.f32.mrf.mxu0
      %v1354 = vpop.f32.mrf.mxu0
      %v1355 = vadd.f32 0.0, %v1354
      %v1356 = vpop.f32.mrf.mxu0
      %1357 = vmatprep.mubr.bf16.mxu0 0
      %1358 = vmatmul.mubr.bf16.gmra.mxu0 %v1309
      %v1359 = vpop.f32.mrf.mxu0
      %v1360 = vadd.f32 0.0, %v1359
      %v1361 = vpop.f32.mrf.mxu0
      %v1362 = vpop.f32.mrf.mxu0
      %v1363 = vadd.f32 0.0, %v1362
      %v1364 = vpop.f32.mrf.mxu0
      %1365 = vmatprep.mubr.bf16.mxu0 0
      %1366 = vmatmul.mubr.bf16.gmra.mxu0 %v1312
      %v1367 = vpop.f32.mrf.mxu0
      %v1368 = vadd.f32 0.0, %v1367
      %v1369 = vpop.f32.mrf.mxu0
      %v1370 = vpop.f32.mrf.mxu0
      %v1371 = vadd.f32 0.0, %v1370
      %v1372 = vpop.f32.mrf.mxu0
      %1373 = vmatprep.mubr.bf16.mxu0 0
      %1374 = vmatmul.mubr.bf16.gmra.mxu0 %v1315
      %v1375 = vpop.f32.mrf.mxu0
      %v1376 = vadd.f32 0.0, %v1375
      %v1377 = vpop.f32.mrf.mxu0
      %v1378 = vpop.f32.mrf.mxu0
      %v1379 = vadd.f32 0.0, %v1378
      %v1380 = vpop.f32.mrf.mxu0
      %1381 = vdwg.mxu0
      %v1382 = vmul.f32 %v1352, %v1240
      %v1383 = vmul.f32 %v1355, %v1241
      %v1384 = vmul.f32 %v1360, %v1242
      %v1385 = vmul.f32 %v1363, %v1243
      %v1386 = vmul.f32 %v1368, %v1244
      %v1387 = vmul.f32 %v1371, %v1245
      %v1388 = vmul.f32 %v1376, %v1246
      %v1389 = vmul.f32 %v1379, %v1247
      %1394 = vrot.lane.b32.xlu0 %v611, 96
      %v1395 = vpop.permute.xlu0 %1394
      %1396 = vrot.lane.b32.xlu0 %v612, 96
      %v1397 = vpop.permute.xlu0 %1396
      %1398 = vrot.lane.b32.xlu0 %v613, 96
      %v1399 = vpop.permute.xlu0 %1398
      %1400 = vrot.lane.b32.xlu0 %v614, 96
      %v1401 = vpop.permute.xlu0 %1400
      %v1407 = vsel %vm951, %v1276, 0
      %v1410 = vsel %vm951, %v1277, 0
      %v1413 = vsel %vm951, %v1278, 0
      %v1416 = vsel %vm951, %v1279, 0
      %1418 = vmatprep.subr.bf16.mxu0 0
      %1419 = vmatpush1.bf16.msra.mxu0 0
      %1420 = vmatprep.subr.bf16.mxu0 0
      %1421 = vmatpush1.bf16.msra.mxu0 0
      %1422 = vmatprep.subr.bf16.mxu0 0
      %1423 = vmatpush1.bf16.msra.mxu0 0
      %1424 = vmatprep.subr.bf16.mxu0 0
      %1425 = vmatpush1.bf16.msra.mxu0 0
      %1426 = vmatprep.subr.bf16.mxu0 0
      %1427 = vmatpush1.bf16.msra.mxu0 %v1401
      %1428 = vmatprep.subr.bf16.mxu0 0
      %1429 = vmatpush1.bf16.msra.mxu0 %v1399
      %1430 = vmatprep.subr.bf16.mxu0 0
      %1431 = vmatpush1.bf16.msra.mxu0 %v1397
      %1432 = vmatprep.subr.bf16.mxu0 0
      %1433 = vmatpush1.bf16.msra.mxu0 %v1395
      %1434 = vmatprep.subr.bf16.mxu0 0
      %1435 = vmatpush2.bf16.msra.mxu0 0
      %1436 = vmatprep.subr.bf16.mxu0 0
      %1437 = vmatpush2.bf16.msra.mxu0 0
      %1438 = vmatprep.subr.bf16.mxu0 0
      %1439 = vmatpush2.bf16.msra.mxu0 0
      %1440 = vmatprep.subr.bf16.mxu0 0
      %1441 = vmatpush2.bf16.msra.mxu0 0
      %1442 = vmatprep.subr.bf16.mxu0 0
      %1443 = vmatpush2.bf16.msra.mxu0 0
      %1444 = vmatprep.subr.bf16.mxu0 0
      %1445 = vmatpush2.bf16.msra.mxu0 0
      %1446 = vmatprep.subr.bf16.mxu0 0
      %1447 = vmatpush2.bf16.msra.mxu0 0
      %1448 = vmatprep.subr.bf16.mxu0 0
      %1449 = vmatpush2.bf16.msra.mxu0 0
      %1450 = vmatprep.mubr.bf16.mxu0 0
      %1451 = vmatmul.mubr.bf16.gmra.mxu0 %v1407
      %v1452 = vpop.f32.mrf.mxu0
      %v1453 = vadd.f32 0.0, %v1452
      %v1454 = vpop.f32.mrf.mxu0
      %v1455 = vpop.f32.mrf.mxu0
      %v1456 = vadd.f32 0.0, %v1455
      %v1457 = vpop.f32.mrf.mxu0
      %1458 = vmatprep.mubr.bf16.mxu0 0
      %1459 = vmatmul.mubr.bf16.gmra.mxu0 %v1410
      %v1460 = vpop.f32.mrf.mxu0
      %v1461 = vadd.f32 0.0, %v1460
      %v1462 = vpop.f32.mrf.mxu0
      %v1463 = vpop.f32.mrf.mxu0
      %v1464 = vadd.f32 0.0, %v1463
      %v1465 = vpop.f32.mrf.mxu0
      %1466 = vmatprep.mubr.bf16.mxu0 0
      %1467 = vmatmul.mubr.bf16.gmra.mxu0 %v1413
      %v1468 = vpop.f32.mrf.mxu0
      %v1469 = vadd.f32 0.0, %v1468
      %v1470 = vpop.f32.mrf.mxu0
      %v1471 = vpop.f32.mrf.mxu0
      %v1472 = vadd.f32 0.0, %v1471
      %v1473 = vpop.f32.mrf.mxu0
      %1474 = vmatprep.mubr.bf16.mxu0 0
      %1475 = vmatmul.mubr.bf16.gmra.mxu0 %v1416
      %v1476 = vpop.f32.mrf.mxu0
      %v1477 = vadd.f32 0.0, %v1476
      %v1478 = vpop.f32.mrf.mxu0
      %v1479 = vpop.f32.mrf.mxu0
      %v1480 = vadd.f32 0.0, %v1479
      %v1481 = vpop.f32.mrf.mxu0
      %1482 = vdwg.mxu0
      %v1483 = vmul.f32 %v1453, %v1248
      %v1484 = vmul.f32 %v1456, %v1249
      %v1485 = vmul.f32 %v1461, %v1250
      %v1486 = vmul.f32 %v1464, %v1251
      %v1487 = vmul.f32 %v1469, %v1252
      %v1488 = vmul.f32 %v1472, %v1253
      %v1489 = vmul.f32 %v1477, %v1254
      %v1490 = vmul.f32 %v1480, %v1255
      %v1492 = vsel %vm335, %v1483, 0
      %v1495 = vsel %vm335, %v1484, 0
      %v1498 = vsel %vm335, %v1485, 0
      %v1501 = vsel %vm335, %v1486, 0
      %v1504 = vsel %vm335, %v1487, 0
      %v1507 = vsel %vm335, %v1488, 0
      %v1510 = vsel %vm335, %v1489, 0
      %v1513 = vsel %vm335, %v1490, 0
      %1515 = vmatprep.subr.mxu0 0.0
      %1516 = vmatpush1.msra.mxu0 0.0
      %1517 = vmatprep.subr.mxu0 0.0
      %1518 = vmatpush1.msra.mxu0 0.0
      %1519 = vmatprep.subr.mxu0 0.0
      %1520 = vmatpush1.msra.mxu0 0.0
      %1521 = vmatprep.subr.mxu0 0.0
      %1522 = vmatpush1.msra.mxu0 0.0
      %1523 = vmatprep.subr.mxu0 0.0
      %1524 = vmatpush1.msra.mxu0 0.0
      %1525 = vmatprep.subr.mxu0 0.0
      %1526 = vmatpush1.msra.mxu0 0.0
      %1527 = vmatprep.subr.mxu0 0.0
      %1528 = vmatpush1.msra.mxu0 0.0
      %1529 = vmatprep.subr.mxu0 0.0
      %1530 = vmatpush1.msra.mxu0 0.0
      %1531 = vmatprep.subr.mxu0 0.0
      %1532 = vmatpush1.msra.mxu0 0.0
      %1533 = vmatprep.subr.mxu0 0.0
      %1534 = vmatpush1.msra.mxu0 0.0
      %1535 = vmatprep.subr.mxu0 0.0
      %1536 = vmatpush1.msra.mxu0 0.0
      %1537 = vmatprep.subr.mxu0 0.0
      %1538 = vmatpush1.msra.mxu0 0.0
      %1539 = vmatprep.subr.mxu0 0.0
      %1540 = vmatpush1.msra.mxu0 %v1295
      %1541 = vmatprep.subr.mxu0 0.0
      %1542 = vmatpush1.msra.mxu0 %v1294
      %1543 = vmatprep.subr.mxu0 0.0
      %1544 = vmatpush1.msra.mxu0 %v1293
      %1545 = vmatprep.subr.mxu0 0.0
      %1546 = vmatpush1.msra.mxu0 %v1292
      %1547 = vmatprep.subr.mxu0 0.0
      %1548 = vmatpush2.msra.mxu0 0.0
      %1549 = vmatprep.subr.mxu0 0.0
      %1550 = vmatpush2.msra.mxu0 0.0
      %1551 = vmatprep.subr.mxu0 0.0
      %1552 = vmatpush2.msra.mxu0 0.0
      %1553 = vmatprep.subr.mxu0 0.0
      %1554 = vmatpush2.msra.mxu0 0.0
      %1555 = vmatprep.subr.mxu0 0.0
      %1556 = vmatpush2.msra.mxu0 0.0
      %1557 = vmatprep.subr.mxu0 0.0
      %1558 = vmatpush2.msra.mxu0 0.0
      %1559 = vmatprep.subr.mxu0 0.0
      %1560 = vmatpush2.msra.mxu0 0.0
      %1561 = vmatprep.subr.mxu0 0.0
      %1562 = vmatpush2.msra.mxu0 0.0
      %1563 = vmatprep.subr.mxu0 0.0
      %1564 = vmatpush2.msra.mxu0 0.0
      %1565 = vmatprep.subr.mxu0 0.0
      %1566 = vmatpush2.msra.mxu0 0.0
      %1567 = vmatprep.subr.mxu0 0.0
      %1568 = vmatpush2.msra.mxu0 0.0
      %1569 = vmatprep.subr.mxu0 0.0
      %1570 = vmatpush2.msra.mxu0 0.0
      %1571 = vmatprep.subr.mxu0 0.0
      %1572 = vmatpush2.msra.mxu0 0.0
      %1573 = vmatprep.subr.mxu0 0.0
      %1574 = vmatpush2.msra.mxu0 0.0
      %1575 = vmatprep.subr.mxu0 0.0
      %1576 = vmatpush2.msra.mxu0 0.0
      %1577 = vmatprep.subr.mxu0 0.0
      %1578 = vmatpush2.msra.mxu0 0.0
      %1579 = vmatprep.mubr.f32.mxu0 0.0
      %1580 = vmatmul.mubr.f32.gmra.mxu0 %v1492
      %v1581 = vpop.f32.mrf.mxu0
      %v1582 = vadd.f32 0.0, %v1581
      %v1583 = vpop.f32.mrf.mxu0
      %1584 = vmatprep.mubr.f32.mxu0 0.0
      %1585 = vmatmul.mubr.f32.gmra.mxu0 %v1495
      %v1586 = vpop.f32.mrf.mxu0
      %v1587 = vadd.f32 0.0, %v1586
      %v1588 = vpop.f32.mrf.mxu0
      %1589 = vmatprep.mubr.f32.mxu0 0.0
      %1590 = vmatmul.mubr.f32.gmra.mxu0 %v1498
      %v1591 = vpop.f32.mrf.mxu0
      %v1592 = vadd.f32 0.0, %v1591
      %v1593 = vpop.f32.mrf.mxu0
      %1594 = vmatprep.mubr.f32.mxu0 0.0
      %1595 = vmatmul.mubr.f32.gmra.mxu0 %v1501
      %v1596 = vpop.f32.mrf.mxu0
      %v1597 = vadd.f32 0.0, %v1596
      %v1598 = vpop.f32.mrf.mxu0
      %1599 = vmatprep.mubr.f32.mxu0 0.0
      %1600 = vmatmul.mubr.f32.gmra.mxu0 %v1504
      %v1601 = vpop.f32.mrf.mxu0
      %v1602 = vadd.f32 0.0, %v1601
      %v1603 = vpop.f32.mrf.mxu0
      %1604 = vmatprep.mubr.f32.mxu0 0.0
      %1605 = vmatmul.mubr.f32.gmra.mxu0 %v1507
      %v1606 = vpop.f32.mrf.mxu0
      %v1607 = vadd.f32 0.0, %v1606
      %v1608 = vpop.f32.mrf.mxu0
      %1609 = vmatprep.mubr.f32.mxu0 0.0
      %1610 = vmatmul.mubr.f32.gmra.mxu0 %v1510
      %v1611 = vpop.f32.mrf.mxu0
      %v1612 = vadd.f32 0.0, %v1611
      %v1613 = vpop.f32.mrf.mxu0
      %1614 = vmatprep.mubr.f32.mxu0 0.0
      %1615 = vmatmul.mubr.f32.gmra.mxu0 %v1513
      %v1616 = vpop.f32.mrf.mxu0
      %v1617 = vadd.f32 0.0, %v1616
      %v1618 = vpop.f32.mrf.mxu0
      %1619 = vdwg.mxu0
      %v1621 = vsel %vm335, %v1382, 0
      %v1624 = vsel %vm335, %v1383, 0
      %v1627 = vsel %vm335, %v1384, 0
      %v1630 = vsel %vm335, %v1385, 0
      %v1633 = vsel %vm335, %v1386, 0
      %v1636 = vsel %vm335, %v1387, 0
      %v1639 = vsel %vm335, %v1388, 0
      %v1642 = vsel %vm335, %v1389, 0
      %1644 = vmatprep.subr.mxu0 0.0
      %1645 = vmatpush1.msra.mxu0 0.0
      %1646 = vmatprep.subr.mxu0 0.0
      %1647 = vmatpush1.msra.mxu0 0.0
      %1648 = vmatprep.subr.mxu0 0.0
      %1649 = vmatpush1.msra.mxu0 0.0
      %1650 = vmatprep.subr.mxu0 0.0
      %1651 = vmatpush1.msra.mxu0 0.0
      %1652 = vmatprep.subr.mxu0 0.0
      %1653 = vmatpush1.msra.mxu0 0.0
      %1654 = vmatprep.subr.mxu0 0.0
      %1655 = vmatpush1.msra.mxu0 0.0
      %1656 = vmatprep.subr.mxu0 0.0
      %1657 = vmatpush1.msra.mxu0 0.0
      %1658 = vmatprep.subr.mxu0 0.0
      %1659 = vmatpush1.msra.mxu0 0.0
      %1660 = vmatprep.subr.mxu0 0.0
      %1661 = vmatpush1.msra.mxu0 0.0
      %1662 = vmatprep.subr.mxu0 0.0
      %1663 = vmatpush1.msra.mxu0 0.0
      %1664 = vmatprep.subr.mxu0 0.0
      %1665 = vmatpush1.msra.mxu0 0.0
      %1666 = vmatprep.subr.mxu0 0.0
      %1667 = vmatpush1.msra.mxu0 0.0
      %1668 = vmatprep.subr.mxu0 0.0
      %1669 = vmatpush1.msra.mxu0 %v1291
      %1670 = vmatprep.subr.mxu0 0.0
      %1671 = vmatpush1.msra.mxu0 %v1290
      %1672 = vmatprep.subr.mxu0 0.0
      %1673 = vmatpush1.msra.mxu0 %v1289
      %1674 = vmatprep.subr.mxu0 0.0
      %1675 = vmatpush1.msra.mxu0 %v1288
      %1676 = vmatprep.subr.mxu0 0.0
      %1677 = vmatpush2.msra.mxu0 0.0
      %1678 = vmatprep.subr.mxu0 0.0
      %1679 = vmatpush2.msra.mxu0 0.0
      %1680 = vmatprep.subr.mxu0 0.0
      %1681 = vmatpush2.msra.mxu0 0.0
      %1682 = vmatprep.subr.mxu0 0.0
      %1683 = vmatpush2.msra.mxu0 0.0
      %1684 = vmatprep.subr.mxu0 0.0
      %1685 = vmatpush2.msra.mxu0 0.0
      %1686 = vmatprep.subr.mxu0 0.0
      %1687 = vmatpush2.msra.mxu0 0.0
      %1688 = vmatprep.subr.mxu0 0.0
      %1689 = vmatpush2.msra.mxu0 0.0
      %1690 = vmatprep.subr.mxu0 0.0
      %1691 = vmatpush2.msra.mxu0 0.0
      %1692 = vmatprep.subr.mxu0 0.0
      %1693 = vmatpush2.msra.mxu0 0.0
      %1694 = vmatprep.subr.mxu0 0.0
      %1695 = vmatpush2.msra.mxu0 0.0
      %1696 = vmatprep.subr.mxu0 0.0
      %1697 = vmatpush2.msra.mxu0 0.0
      %1698 = vmatprep.subr.mxu0 0.0
      %1699 = vmatpush2.msra.mxu0 0.0
      %1700 = vmatprep.subr.mxu0 0.0
      %1701 = vmatpush2.msra.mxu0 0.0
      %1702 = vmatprep.subr.mxu0 0.0
      %1703 = vmatpush2.msra.mxu0 0.0
      %1704 = vmatprep.subr.mxu0 0.0
      %1705 = vmatpush2.msra.mxu0 0.0
      %1706 = vmatprep.subr.mxu0 0.0
      %1707 = vmatpush2.msra.mxu0 0.0
      %1708 = vmatprep.mubr.f32.mxu0 0.0
      %1709 = vmatmul.mubr.f32.gmra.mxu0 %v1621
      %v1710 = vpop.f32.mrf.mxu0
      %v1711 = vadd.f32 %v1582, %v1710
      %v1712 = vpop.f32.mrf.mxu0
      %1713 = vmatprep.mubr.f32.mxu0 0.0
      %1714 = vmatmul.mubr.f32.gmra.mxu0 %v1624
      %v1715 = vpop.f32.mrf.mxu0
      %v1716 = vadd.f32 %v1587, %v1715
      %v1717 = vpop.f32.mrf.mxu0
      %1718 = vmatprep.mubr.f32.mxu0 0.0
      %1719 = vmatmul.mubr.f32.gmra.mxu0 %v1627
      %v1720 = vpop.f32.mrf.mxu0
      %v1721 = vadd.f32 %v1592, %v1720
      %v1722 = vpop.f32.mrf.mxu0
      %1723 = vmatprep.mubr.f32.mxu0 0.0
      %1724 = vmatmul.mubr.f32.gmra.mxu0 %v1630
      %v1725 = vpop.f32.mrf.mxu0
      %v1726 = vadd.f32 %v1597, %v1725
      %v1727 = vpop.f32.mrf.mxu0
      %1728 = vmatprep.mubr.f32.mxu0 0.0
      %1729 = vmatmul.mubr.f32.gmra.mxu0 %v1633
      %v1730 = vpop.f32.mrf.mxu0
      %v1731 = vadd.f32 %v1602, %v1730
      %v1732 = vpop.f32.mrf.mxu0
      %1733 = vmatprep.mubr.f32.mxu0 0.0
      %1734 = vmatmul.mubr.f32.gmra.mxu0 %v1636
      %v1735 = vpop.f32.mrf.mxu0
      %v1736 = vadd.f32 %v1607, %v1735
      %v1737 = vpop.f32.mrf.mxu0
      %1738 = vmatprep.mubr.f32.mxu0 0.0
      %1739 = vmatmul.mubr.f32.gmra.mxu0 %v1639
      %v1740 = vpop.f32.mrf.mxu0
      %v1741 = vadd.f32 %v1612, %v1740
      %v1742 = vpop.f32.mrf.mxu0
      %1743 = vmatprep.mubr.f32.mxu0 0.0
      %1744 = vmatmul.mubr.f32.gmra.mxu0 %v1642
      %v1745 = vpop.f32.mrf.mxu0
      %v1746 = vadd.f32 %v1617, %v1745
      %v1747 = vpop.f32.mrf.mxu0
      %1748 = vdwg.mxu0
      %1749 = vrot.lane.b32.xlu0 %v611, 64
      %v1750 = vpop.permute.xlu0 %1749
      %1751 = vrot.lane.b32.xlu0 %v612, 64
      %v1752 = vpop.permute.xlu0 %1751
      %1753 = vrot.lane.b32.xlu0 %v613, 64
      %v1754 = vpop.permute.xlu0 %1753
      %1755 = vrot.lane.b32.xlu0 %v614, 64
      %v1756 = vpop.permute.xlu0 %1755
      %v1762 = vsel %vm951, %v1280, 0
      %v1765 = vsel %vm951, %v1281, 0
      %v1768 = vsel %vm951, %v1282, 0
      %v1771 = vsel %vm951, %v1283, 0
      %1773 = vmatprep.subr.bf16.mxu0 0
      %1774 = vmatpush1.bf16.msra.mxu0 0
      %1775 = vmatprep.subr.bf16.mxu0 0
      %1776 = vmatpush1.bf16.msra.mxu0 0
      %1777 = vmatprep.subr.bf16.mxu0 0
      %1778 = vmatpush1.bf16.msra.mxu0 0
      %1779 = vmatprep.subr.bf16.mxu0 0
      %1780 = vmatpush1.bf16.msra.mxu0 0
      %1781 = vmatprep.subr.bf16.mxu0 0
      %1782 = vmatpush1.bf16.msra.mxu0 %v1756
      %1783 = vmatprep.subr.bf16.mxu0 0
      %1784 = vmatpush1.bf16.msra.mxu0 %v1754
      %1785 = vmatprep.subr.bf16.mxu0 0
      %1786 = vmatpush1.bf16.msra.mxu0 %v1752
      %1787 = vmatprep.subr.bf16.mxu0 0
      %1788 = vmatpush1.bf16.msra.mxu0 %v1750
      %1789 = vmatprep.subr.bf16.mxu0 0
      %1790 = vmatpush2.bf16.msra.mxu0 0
      %1791 = vmatprep.subr.bf16.mxu0 0
      %1792 = vmatpush2.bf16.msra.mxu0 0
      %1793 = vmatprep.subr.bf16.mxu0 0
      %1794 = vmatpush2.bf16.msra.mxu0 0
      %1795 = vmatprep.subr.bf16.mxu0 0
      %1796 = vmatpush2.bf16.msra.mxu0 0
      %1797 = vmatprep.subr.bf16.mxu0 0
      %1798 = vmatpush2.bf16.msra.mxu0 0
      %1799 = vmatprep.subr.bf16.mxu0 0
      %1800 = vmatpush2.bf16.msra.mxu0 0
      %1801 = vmatprep.subr.bf16.mxu0 0
      %1802 = vmatpush2.bf16.msra.mxu0 0
      %1803 = vmatprep.subr.bf16.mxu0 0
      %1804 = vmatpush2.bf16.msra.mxu0 0
      %1805 = vmatprep.mubr.bf16.mxu0 0
      %1806 = vmatmul.mubr.bf16.gmra.mxu0 %v1762
      %v1807 = vpop.f32.mrf.mxu0
      %v1808 = vadd.f32 0.0, %v1807
      %v1809 = vpop.f32.mrf.mxu0
      %v1810 = vpop.f32.mrf.mxu0
      %v1811 = vadd.f32 0.0, %v1810
      %v1812 = vpop.f32.mrf.mxu0
      %1813 = vmatprep.mubr.bf16.mxu0 0
      %1814 = vmatmul.mubr.bf16.gmra.mxu0 %v1765
      %v1815 = vpop.f32.mrf.mxu0
      %v1816 = vadd.f32 0.0, %v1815
      %v1817 = vpop.f32.mrf.mxu0
      %v1818 = vpop.f32.mrf.mxu0
      %v1819 = vadd.f32 0.0, %v1818
      %v1820 = vpop.f32.mrf.mxu0
      %1821 = vmatprep.mubr.bf16.mxu0 0
      %1822 = vmatmul.mubr.bf16.gmra.mxu0 %v1768
      %v1823 = vpop.f32.mrf.mxu0
      %v1824 = vadd.f32 0.0, %v1823
      %v1825 = vpop.f32.mrf.mxu0
      %v1826 = vpop.f32.mrf.mxu0
      %v1827 = vadd.f32 0.0, %v1826
      %v1828 = vpop.f32.mrf.mxu0
      %1829 = vmatprep.mubr.bf16.mxu0 0
      %1830 = vmatmul.mubr.bf16.gmra.mxu0 %v1771
      %v1831 = vpop.f32.mrf.mxu0
      %v1832 = vadd.f32 0.0, %v1831
      %v1833 = vpop.f32.mrf.mxu0
      %v1834 = vpop.f32.mrf.mxu0
      %v1835 = vadd.f32 0.0, %v1834
      %v1836 = vpop.f32.mrf.mxu0
      %1837 = vdwg.mxu0
      %v1838 = vmul.f32 %v1808, %v1256
      %v1839 = vmul.f32 %v1811, %v1257
      %v1840 = vmul.f32 %v1816, %v1258
      %v1841 = vmul.f32 %v1819, %v1259
      %v1842 = vmul.f32 %v1824, %v1260
      %v1843 = vmul.f32 %v1827, %v1261
      %v1844 = vmul.f32 %v1832, %v1262
      %v1845 = vmul.f32 %v1835, %v1263
      %v1847 = vsel %vm335, %v1838, 0
      %v1850 = vsel %vm335, %v1839, 0
      %v1853 = vsel %vm335, %v1840, 0
      %v1856 = vsel %vm335, %v1841, 0
      %v1859 = vsel %vm335, %v1842, 0
      %v1862 = vsel %vm335, %v1843, 0
      %v1865 = vsel %vm335, %v1844, 0
      %v1868 = vsel %vm335, %v1845, 0
      %1870 = vmatprep.subr.mxu0 0.0
      %1871 = vmatpush1.msra.mxu0 0.0
      %1872 = vmatprep.subr.mxu0 0.0
      %1873 = vmatpush1.msra.mxu0 0.0
      %1874 = vmatprep.subr.mxu0 0.0
      %1875 = vmatpush1.msra.mxu0 0.0
      %1876 = vmatprep.subr.mxu0 0.0
      %1877 = vmatpush1.msra.mxu0 0.0
      %1878 = vmatprep.subr.mxu0 0.0
      %1879 = vmatpush1.msra.mxu0 0.0
      %1880 = vmatprep.subr.mxu0 0.0
      %1881 = vmatpush1.msra.mxu0 0.0
      %1882 = vmatprep.subr.mxu0 0.0
      %1883 = vmatpush1.msra.mxu0 0.0
      %1884 = vmatprep.subr.mxu0 0.0
      %1885 = vmatpush1.msra.mxu0 0.0
      %1886 = vmatprep.subr.mxu0 0.0
      %1887 = vmatpush1.msra.mxu0 0.0
      %1888 = vmatprep.subr.mxu0 0.0
      %1889 = vmatpush1.msra.mxu0 0.0
      %1890 = vmatprep.subr.mxu0 0.0
      %1891 = vmatpush1.msra.mxu0 0.0
      %1892 = vmatprep.subr.mxu0 0.0
      %1893 = vmatpush1.msra.mxu0 0.0
      %1894 = vmatprep.subr.mxu0 0.0
      %1895 = vmatpush1.msra.mxu0 %v1299
      %1896 = vmatprep.subr.mxu0 0.0
      %1897 = vmatpush1.msra.mxu0 %v1298
      %1898 = vmatprep.subr.mxu0 0.0
      %1899 = vmatpush1.msra.mxu0 %v1297
      %1900 = vmatprep.subr.mxu0 0.0
      %1901 = vmatpush1.msra.mxu0 %v1296
      %1902 = vmatprep.subr.mxu0 0.0
      %1903 = vmatpush2.msra.mxu0 0.0
      %1904 = vmatprep.subr.mxu0 0.0
      %1905 = vmatpush2.msra.mxu0 0.0
      %1906 = vmatprep.subr.mxu0 0.0
      %1907 = vmatpush2.msra.mxu0 0.0
      %1908 = vmatprep.subr.mxu0 0.0
      %1909 = vmatpush2.msra.mxu0 0.0
      %1910 = vmatprep.subr.mxu0 0.0
      %1911 = vmatpush2.msra.mxu0 0.0
      %1912 = vmatprep.subr.mxu0 0.0
      %1913 = vmatpush2.msra.mxu0 0.0
      %1914 = vmatprep.subr.mxu0 0.0
      %1915 = vmatpush2.msra.mxu0 0.0
      %1916 = vmatprep.subr.mxu0 0.0
      %1917 = vmatpush2.msra.mxu0 0.0
      %1918 = vmatprep.subr.mxu0 0.0
      %1919 = vmatpush2.msra.mxu0 0.0
      %1920 = vmatprep.subr.mxu0 0.0
      %1921 = vmatpush2.msra.mxu0 0.0
      %1922 = vmatprep.subr.mxu0 0.0
      %1923 = vmatpush2.msra.mxu0 0.0
      %1924 = vmatprep.subr.mxu0 0.0
      %1925 = vmatpush2.msra.mxu0 0.0
      %1926 = vmatprep.subr.mxu0 0.0
      %1927 = vmatpush2.msra.mxu0 0.0
      %1928 = vmatprep.subr.mxu0 0.0
      %1929 = vmatpush2.msra.mxu0 0.0
      %1930 = vmatprep.subr.mxu0 0.0
      %1931 = vmatpush2.msra.mxu0 0.0
      %1932 = vmatprep.subr.mxu0 0.0
      %1933 = vmatpush2.msra.mxu0 0.0
      %1934 = vmatprep.mubr.f32.mxu0 0.0
      %1935 = vmatmul.mubr.f32.gmra.mxu0 %v1847
      %v1936 = vpop.f32.mrf.mxu0
      %v1937 = vadd.f32 0.0, %v1936
      %v1938 = vpop.f32.mrf.mxu0
      %1939 = vmatprep.mubr.f32.mxu0 0.0
      %1940 = vmatmul.mubr.f32.gmra.mxu0 %v1850
      %v1941 = vpop.f32.mrf.mxu0
      %v1942 = vadd.f32 0.0, %v1941
      %v1943 = vpop.f32.mrf.mxu0
      %1944 = vmatprep.mubr.f32.mxu0 0.0
      %1945 = vmatmul.mubr.f32.gmra.mxu0 %v1853
      %v1946 = vpop.f32.mrf.mxu0
      %v1947 = vadd.f32 0.0, %v1946
      %v1948 = vpop.f32.mrf.mxu0
      %1949 = vmatprep.mubr.f32.mxu0 0.0
      %1950 = vmatmul.mubr.f32.gmra.mxu0 %v1856
      %v1951 = vpop.f32.mrf.mxu0
      %v1952 = vadd.f32 0.0, %v1951
      %v1953 = vpop.f32.mrf.mxu0
      %1954 = vmatprep.mubr.f32.mxu0 0.0
      %1955 = vmatmul.mubr.f32.gmra.mxu0 %v1859
      %v1956 = vpop.f32.mrf.mxu0
      %v1957 = vadd.f32 0.0, %v1956
      %v1958 = vpop.f32.mrf.mxu0
      %1959 = vmatprep.mubr.f32.mxu0 0.0
      %1960 = vmatmul.mubr.f32.gmra.mxu0 %v1862
      %v1961 = vpop.f32.mrf.mxu0
      %v1962 = vadd.f32 0.0, %v1961
      %v1963 = vpop.f32.mrf.mxu0
      %1964 = vmatprep.mubr.f32.mxu0 0.0
      %1965 = vmatmul.mubr.f32.gmra.mxu0 %v1865
      %v1966 = vpop.f32.mrf.mxu0
      %v1967 = vadd.f32 0.0, %v1966
      %v1968 = vpop.f32.mrf.mxu0
      %1969 = vmatprep.mubr.f32.mxu0 0.0
      %1970 = vmatmul.mubr.f32.gmra.mxu0 %v1868
      %v1971 = vpop.f32.mrf.mxu0
      %v1972 = vadd.f32 0.0, %v1971
      %v1973 = vpop.f32.mrf.mxu0
      %1974 = vdwg.mxu0
      %v1975 = vadd.f32 %v1711, %v1937
      %v1976 = vadd.f32 %v1716, %v1942
      %v1977 = vadd.f32 %v1721, %v1947
      %v1978 = vadd.f32 %v1726, %v1952
      %v1979 = vadd.f32 %v1731, %v1957
      %v1980 = vadd.f32 %v1736, %v1962
      %v1981 = vadd.f32 %v1741, %v1967
      %v1982 = vadd.f32 %v1746, %v1972
      %1983 = vrot.lane.b32.xlu0 %v611, 32
      %v1984 = vpop.permute.xlu0 %1983
      %1985 = vrot.lane.b32.xlu0 %v612, 32
      %v1986 = vpop.permute.xlu0 %1985
      %1987 = vrot.lane.b32.xlu0 %v613, 32
      %v1988 = vpop.permute.xlu0 %1987
      %1989 = vrot.lane.b32.xlu0 %v614, 32
      %v1990 = vpop.permute.xlu0 %1989
      %v1996 = vsel %vm951, %v1284, 0
      %v1999 = vsel %vm951, %v1285, 0
      %v2002 = vsel %vm951, %v1286, 0
      %v2005 = vsel %vm951, %v1287, 0
      %2007 = vmatprep.subr.bf16.mxu0 0
      %2008 = vmatpush1.bf16.msra.mxu0 0
      %2009 = vmatprep.subr.bf16.mxu0 0
      %2010 = vmatpush1.bf16.msra.mxu0 0
      %2011 = vmatprep.subr.bf16.mxu0 0
      %2012 = vmatpush1.bf16.msra.mxu0 0
      %2013 = vmatprep.subr.bf16.mxu0 0
      %2014 = vmatpush1.bf16.msra.mxu0 0
      %2015 = vmatprep.subr.bf16.mxu0 0
      %2016 = vmatpush1.bf16.msra.mxu0 %v1990
      %2017 = vmatprep.subr.bf16.mxu0 0
      %2018 = vmatpush1.bf16.msra.mxu0 %v1988
      %2019 = vmatprep.subr.bf16.mxu0 0
      %2020 = vmatpush1.bf16.msra.mxu0 %v1986
      %2021 = vmatprep.subr.bf16.mxu0 0
      %2022 = vmatpush1.bf16.msra.mxu0 %v1984
      %2023 = vmatprep.subr.bf16.mxu0 0
      %2024 = vmatpush2.bf16.msra.mxu0 0
      %2025 = vmatprep.subr.bf16.mxu0 0
      %2026 = vmatpush2.bf16.msra.mxu0 0
      %2027 = vmatprep.subr.bf16.mxu0 0
      %2028 = vmatpush2.bf16.msra.mxu0 0
      %2029 = vmatprep.subr.bf16.mxu0 0
      %2030 = vmatpush2.bf16.msra.mxu0 0
      %2031 = vmatprep.subr.bf16.mxu0 0
      %2032 = vmatpush2.bf16.msra.mxu0 0
      %2033 = vmatprep.subr.bf16.mxu0 0
      %2034 = vmatpush2.bf16.msra.mxu0 0
      %2035 = vmatprep.subr.bf16.mxu0 0
      %2036 = vmatpush2.bf16.msra.mxu0 0
      %2037 = vmatprep.subr.bf16.mxu0 0
      %2038 = vmatpush2.bf16.msra.mxu0 0
      %2039 = vmatprep.mubr.bf16.mxu0 0
      %2040 = vmatmul.mubr.bf16.gmra.mxu0 %v1996
      %v2041 = vpop.f32.mrf.mxu0
      %v2042 = vadd.f32 0.0, %v2041
      %v2043 = vpop.f32.mrf.mxu0
      %v2044 = vpop.f32.mrf.mxu0
      %v2045 = vadd.f32 0.0, %v2044
      %v2046 = vpop.f32.mrf.mxu0
      %2047 = vmatprep.mubr.bf16.mxu0 0
      %2048 = vmatmul.mubr.bf16.gmra.mxu0 %v1999
      %v2049 = vpop.f32.mrf.mxu0
      %v2050 = vadd.f32 0.0, %v2049
      %v2051 = vpop.f32.mrf.mxu0
      %v2052 = vpop.f32.mrf.mxu0
      %v2053 = vadd.f32 0.0, %v2052
      %v2054 = vpop.f32.mrf.mxu0
      %2055 = vmatprep.mubr.bf16.mxu0 0
      %2056 = vmatmul.mubr.bf16.gmra.mxu0 %v2002
      %v2057 = vpop.f32.mrf.mxu0
      %v2058 = vadd.f32 0.0, %v2057
      %v2059 = vpop.f32.mrf.mxu0
      %v2060 = vpop.f32.mrf.mxu0
      %v2061 = vadd.f32 0.0, %v2060
      %v2062 = vpop.f32.mrf.mxu0
      %2063 = vmatprep.mubr.bf16.mxu0 0
      %2064 = vmatmul.mubr.bf16.gmra.mxu0 %v2005
      %v2065 = vpop.f32.mrf.mxu0
      %v2066 = vadd.f32 0.0, %v2065
      %v2067 = vpop.f32.mrf.mxu0
      %v2068 = vpop.f32.mrf.mxu0
      %v2069 = vadd.f32 0.0, %v2068
      %v2070 = vpop.f32.mrf.mxu0
      %2071 = vdwg.mxu0
      %v2072 = vmul.f32 %v2042, %v1264
      %v2073 = vmul.f32 %v2045, %v1265
      %v2074 = vmul.f32 %v2050, %v1266
      %v2075 = vmul.f32 %v2053, %v1267
      %v2076 = vmul.f32 %v2058, %v1268
      %v2077 = vmul.f32 %v2061, %v1269
      %v2078 = vmul.f32 %v2066, %v1270
      %v2079 = vmul.f32 %v2069, %v1271
      %v2081 = vsel %vm335, %v2072, 0
      %v2084 = vsel %vm335, %v2073, 0
      %v2087 = vsel %vm335, %v2074, 0
      %v2090 = vsel %vm335, %v2075, 0
      %v2093 = vsel %vm335, %v2076, 0
      %v2096 = vsel %vm335, %v2077, 0
      %v2099 = vsel %vm335, %v2078, 0
      %v2102 = vsel %vm335, %v2079, 0
      %2104 = vmatprep.subr.mxu0 0.0
      %2105 = vmatpush1.msra.mxu0 0.0
      %2106 = vmatprep.subr.mxu0 0.0
      %2107 = vmatpush1.msra.mxu0 0.0
      %2108 = vmatprep.subr.mxu0 0.0
      %2109 = vmatpush1.msra.mxu0 0.0
      %2110 = vmatprep.subr.mxu0 0.0
      %2111 = vmatpush1.msra.mxu0 0.0
      %2112 = vmatprep.subr.mxu0 0.0
      %2113 = vmatpush1.msra.mxu0 0.0
      %2114 = vmatprep.subr.mxu0 0.0
      %2115 = vmatpush1.msra.mxu0 0.0
      %2116 = vmatprep.subr.mxu0 0.0
      %2117 = vmatpush1.msra.mxu0 0.0
      %2118 = vmatprep.subr.mxu0 0.0
      %2119 = vmatpush1.msra.mxu0 0.0
      %2120 = vmatprep.subr.mxu0 0.0
      %2121 = vmatpush1.msra.mxu0 0.0
      %2122 = vmatprep.subr.mxu0 0.0
      %2123 = vmatpush1.msra.mxu0 0.0
      %2124 = vmatprep.subr.mxu0 0.0
      %2125 = vmatpush1.msra.mxu0 0.0
      %2126 = vmatprep.subr.mxu0 0.0
      %2127 = vmatpush1.msra.mxu0 0.0
      %2128 = vmatprep.subr.mxu0 0.0
      %2129 = vmatpush1.msra.mxu0 %v1303
      %2130 = vmatprep.subr.mxu0 0.0
      %2131 = vmatpush1.msra.mxu0 %v1302
      %2132 = vmatprep.subr.mxu0 0.0
      %2133 = vmatpush1.msra.mxu0 %v1301
      %2134 = vmatprep.subr.mxu0 0.0
      %2135 = vmatpush1.msra.mxu0 %v1300
      %2136 = vmatprep.subr.mxu0 0.0
      %2137 = vmatpush2.msra.mxu0 0.0
      %2138 = vmatprep.subr.mxu0 0.0
      %2139 = vmatpush2.msra.mxu0 0.0
      %2140 = vmatprep.subr.mxu0 0.0
      %2141 = vmatpush2.msra.mxu0 0.0
      %2142 = vmatprep.subr.mxu0 0.0
      %2143 = vmatpush2.msra.mxu0 0.0
      %2144 = vmatprep.subr.mxu0 0.0
      %2145 = vmatpush2.msra.mxu0 0.0
      %2146 = vmatprep.subr.mxu0 0.0
      %2147 = vmatpush2.msra.mxu0 0.0
      %2148 = vmatprep.subr.mxu0 0.0
      %2149 = vmatpush2.msra.mxu0 0.0
      %2150 = vmatprep.subr.mxu0 0.0
      %2151 = vmatpush2.msra.mxu0 0.0
      %2152 = vmatprep.subr.mxu0 0.0
      %2153 = vmatpush2.msra.mxu0 0.0
      %2154 = vmatprep.subr.mxu0 0.0
      %2155 = vmatpush2.msra.mxu0 0.0
      %2156 = vmatprep.subr.mxu0 0.0
      %2157 = vmatpush2.msra.mxu0 0.0
      %2158 = vmatprep.subr.mxu0 0.0
      %2159 = vmatpush2.msra.mxu0 0.0
      %2160 = vmatprep.subr.mxu0 0.0
      %2161 = vmatpush2.msra.mxu0 0.0
      %2162 = vmatprep.subr.mxu0 0.0
      %2163 = vmatpush2.msra.mxu0 0.0
      %2164 = vmatprep.subr.mxu0 0.0
      %2165 = vmatpush2.msra.mxu0 0.0
      %2166 = vmatprep.subr.mxu0 0.0
      %2167 = vmatpush2.msra.mxu0 0.0
      %2168 = vmatprep.mubr.f32.mxu0 0.0
      %2169 = vmatmul.mubr.f32.gmra.mxu0 %v2081
      %v2170 = vpop.f32.mrf.mxu0
      %v2171 = vadd.f32 0.0, %v2170
      %v2172 = vpop.f32.mrf.mxu0
      %2173 = vmatprep.mubr.f32.mxu0 0.0
      %2174 = vmatmul.mubr.f32.gmra.mxu0 %v2084
      %v2175 = vpop.f32.mrf.mxu0
      %v2176 = vadd.f32 0.0, %v2175
      %v2177 = vpop.f32.mrf.mxu0
      %2178 = vmatprep.mubr.f32.mxu0 0.0
      %2179 = vmatmul.mubr.f32.gmra.mxu0 %v2087
      %v2180 = vpop.f32.mrf.mxu0
      %v2181 = vadd.f32 0.0, %v2180
      %v2182 = vpop.f32.mrf.mxu0
      %2183 = vmatprep.mubr.f32.mxu0 0.0
      %2184 = vmatmul.mubr.f32.gmra.mxu0 %v2090
      %v2185 = vpop.f32.mrf.mxu0
      %v2186 = vadd.f32 0.0, %v2185
      %v2187 = vpop.f32.mrf.mxu0
      %2188 = vmatprep.mubr.f32.mxu0 0.0
      %2189 = vmatmul.mubr.f32.gmra.mxu0 %v2093
      %v2190 = vpop.f32.mrf.mxu0
      %v2191 = vadd.f32 0.0, %v2190
      %v2192 = vpop.f32.mrf.mxu0
      %2193 = vmatprep.mubr.f32.mxu0 0.0
      %2194 = vmatmul.mubr.f32.gmra.mxu0 %v2096
      %v2195 = vpop.f32.mrf.mxu0
      %v2196 = vadd.f32 0.0, %v2195
      %v2197 = vpop.f32.mrf.mxu0
      %2198 = vmatprep.mubr.f32.mxu0 0.0
      %2199 = vmatmul.mubr.f32.gmra.mxu0 %v2099
      %v2200 = vpop.f32.mrf.mxu0
      %v2201 = vadd.f32 0.0, %v2200
      %v2202 = vpop.f32.mrf.mxu0
      %2203 = vmatprep.mubr.f32.mxu0 0.0
      %2204 = vmatmul.mubr.f32.gmra.mxu0 %v2102
      %v2205 = vpop.f32.mrf.mxu0
      %v2206 = vadd.f32 0.0, %v2205
      %v2207 = vpop.f32.mrf.mxu0
      %2208 = vdwg.mxu0
      %v2209 = vadd.f32 %v1975, %v2171
      %v2210 = vadd.f32 %v1976, %v2176
      %v2211 = vadd.f32 %v1977, %v2181
      %v2212 = vadd.f32 %v1978, %v2186
      %v2213 = vadd.f32 %v1979, %v2191
      %v2214 = vadd.f32 %v1980, %v2196
      %v2215 = vadd.f32 %v1981, %v2201
      %v2216 = vadd.f32 %v1982, %v2206
      %v2218 = vlaneseq
      %v2219 = vshrl.u32 %v2218, 7
      %v2220 = vsub.s32 0, %v2219
      %v2221 = vrot.slane %v1304, %v2220
      %v2223 = vadd.f32 %v2209, %v2221
      %v2224 = vadd.f32 %v2210, %v2221
      %v2225 = vadd.f32 %v2211, %v2221
      %v2226 = vadd.f32 %v2212, %v2221
      %v2227 = vadd.f32 %v2213, %v2221
      %v2228 = vadd.f32 %v2214, %v2221
      %v2229 = vadd.f32 %v2215, %v2221
      %v2230 = vadd.f32 %v2216, %v2221
      %2231 = vst.msk [vmem:[%s251] sm:$0xff] %vm335, %v2223
      %2232 = vst.msk [vmem:[%s251 + $0x8] sm:$0xff] %vm335, %v2224
      %2233 = vst.msk [vmem:[%s251 + $0x10] sm:$0xff] %vm335, %v2225
      %2234 = vst.msk [vmem:[%s251 + $0x18] sm:$0xff] %vm335, %v2226
      %2235 = vst.msk [vmem:[%s251 + $0x20] sm:$0xff] %vm335, %v2227
      %2236 = vst.msk [vmem:[%s251 + $0x28] sm:$0xff] %vm335, %v2228
      %2237 = vst.msk [vmem:[%s251 + $0x30] sm:$0xff] %vm335, %v2229
      %2238 = vst.msk [vmem:[%s251 + $0x38] sm:$0xff] %vm335, %v2230
      %p2239 = scmp.lt.s32.totalorder %s17, 1
      %s2240 = scalar_select %p2239, %s17, 1
      %s2241 = smul.addr %s2240, 8
      %s2242 = smul.addr %s2241, 8
      %s2243 = scalar_lea.vmem %s6, %s2242
      // Predicated region
      $region45: #{tpu_custom_call.1} parent=43 // pred_check
        %p2244 = pneg %p166
      $region46: #{tpu_custom_call.1} parent=43 // pred_check_branch
        %2246 = sbr.rel (%p2244) target = $region48
      $region47: #{tpu_custom_call.1} parent=43 // pred_region
        _
      $region48: #{tpu_custom_call.1} parent=43 // pred_fallthru
        _
    $region44: #{tpu_custom_call.1} parent=5 // pred_fallthru
      _
    %p2247 = scmp.le.s32.totalorder 2, %s12
    // Predicated region
    $region49: #{tpu_custom_call.1} parent=5 // pred_check
      %p2248 = pneg %p2247
    $region50: #{tpu_custom_call.1} parent=5 // pred_check_branch
      %2250 = sbr.rel (%p2248) target = $region52
    $region51: #{tpu_custom_call.1} parent=5 // pred_region
      %s2251 = ssub.s32 %s12, 2
      // Predicated region
      $region53: #{tpu_custom_call.1} parent=51 // pred_check
        %p2252 = pneg %p172
      $region54: #{tpu_custom_call.1} parent=51 // pred_check_branch
        %2254 = sbr.rel (%p2252) target = $region56
      $region55: #{tpu_custom_call.1} parent=51 // pred_region
        %p2255 = scmp.lt.s32.totalorder %s18, 1
        %s2256 = scalar_select %p2255, %s18, 1
        %s2257 = smul.addr %s2256, 8
        %s2258 = smul.addr %s2257, 8
        %s2259 = scalar_lea.vmem %s6, %s2258
      $region56: #{tpu_custom_call.1} parent=51 // pred_fallthru
        _
    $region52: #{tpu_custom_call.1} parent=5 // pred_fallthru
      _
  $region6: #{tpu_custom_call.1} parent=0 // loop_footer
    %s16 = sadd.s32 1, %s12
  $region7: #{tpu_custom_call.1} parent=0 // loop_footer_branch
    %11 = sbr.rel target = $region3
  $region8: #{tpu_custom_call.1} parent=0 // loop_exit
    _

</llo_original>
